<compile_context>
chip_gen: v5e
topology: v5e:2x2
jax: 0.10.0
libtpu: 0.0.40
codegen_flags: <defaults>
</compile_context>

<pallas_src>
import functools

import jax
import jax.numpy as jnp
from jax.experimental import pallas as pl
from jax.experimental.pallas import tpu as pltpu


def _basic_conv_kernel(x_ref, mask_ref, w1_ref, b1_ref, w2_ref, b2_ref,
                       out_ref, xslab_ref, hslab_ref,
                       *, H, W, C, Cp, nb, chunk):
    """Per-grid-step body.

    x_ref:    (nb, C, H*W)   raw images, flattened spatial on the lane axis
    mask_ref: (2, H*W)       row 0: (j != 0), row 1: (j != W-1), float32
    w*_ref:   (Cp, 9*Cp)     im2col weights (tap-major, channel-minor), f32
    b*_ref:   (Cp, 1)        biases (zero in the padded channel rows), f32
    out_ref:  (nb, C, H*W)
    xslab_ref / hslab_ref: (Cp, H*W + 2*(W+1)) f32 VMEM scratch slabs
    """
    HW = H * W
    P = W + 1                      # wing length == max |tap offset| in flat coords
    n_chunks = HW // chunk

    w1 = w1_ref[...]
    w2 = w2_ref[...]
    b1 = b1_ref[...]
    b2 = b2_ref[...]
    mask_l = mask_ref[0:1, :]      # zero where j == 0     (needed by dx = -1 taps)
    mask_r = mask_ref[1:2, :]      # zero where j == W - 1 (needed by dx = +1 taps)

    # Slab start offset for tap (dy, dx); dx decides which edge mask applies.
    taps = [(dy * W + dx + P, dx) for dy in (-1, 0, 1) for dx in (-1, 0, 1)]

    def build_patches(slab_ref, o):
        rows = []
        for s, dx in taps:
            t = slab_ref[:, o + s:o + s + chunk]          # static lane slice
            if dx == -1:
                t = t * mask_l[:, o:o + chunk]
            elif dx == 1:
                t = t * mask_r[:, o:o + chunk]
            rows.append(t)
        # Cp is a full sublane group, so this concat is plain vreg stacking.
        return jnp.concatenate(rows, axis=0)              # (9*Cp, chunk)

    for b in range(nb):
        # --- stage image b into the zero-winged, channel-padded slab ---------
        xslab_ref[...] = jnp.zeros_like(xslab_ref)
        xslab_ref[0:C, P:P + HW] = x_ref[b].astype(jnp.float32)
        hslab_ref[...] = jnp.zeros_like(hslab_ref)        # only wings must be 0

        # --- conv1 + ReLU (chunked over the pixel/lane axis) -----------------
        for ci in range(n_chunks):
            o = ci * chunk
            p1 = build_patches(xslab_ref, o)
            h1 = jnp.dot(w1, p1, preferred_element_type=jnp.float32) + b1
            h1 = jnp.maximum(h1, 0.0)
            # Padded-channel rows of h1 are exactly 0 (zero weight rows + bias),
            # so storing all Cp rows keeps the slab's channel padding correct.
            hslab_ref[:, P + o:P + o + chunk] = h1

        # --- conv2 + ReLU + residual add, chunk by chunk ----------------------
        for ci in range(n_chunks):
            o = ci * chunk
            p2 = build_patches(hslab_ref, o)
            h2 = jnp.dot(w2, p2, preferred_element_type=jnp.float32) + b2
            h2 = jnp.maximum(h2, 0.0)
            res = x_ref[b, :, o:o + chunk].astype(jnp.float32)
            out_ref[b, :, o:o + chunk] = (res + h2[0:C, :]).astype(out_ref.dtype)


def _round_up(v, m):
    return (v + m - 1) // m * m


def _pick_chunk(HW, cap=2048):
    """Pixel-axis chunk size: caps the (9*Cp, chunk) im2col temporaries."""
    if HW <= cap:
        return HW
    c = cap - cap % 128
    while c >= 128:
        if HW % c == 0:
            return c
        c -= 128
    # TODO(synk): support a ragged tail chunk for awkward H*W; fall back to
    # the whole axis (still correct, just larger temporaries).
    return HW


def _pick_nb(N, C, HW, itemsize):
    """Images per grid step: amortise the ~0.35us per-step overhead without
    starving the batch-parallel axis (keep >= 2 grid steps when N >= 2)."""
    cap = max(1, (4 * 1024 * 1024) // max(1, 4 * C * HW * itemsize))
    cap = min(cap, 8)
    if N >= 2:
        cap = min(cap, N // 2)
    nb = 1
    for d in range(1, min(N, cap) + 1):
        if N % d == 0:
            nb = d
    return nb


def _vmem_limit_bytes():
    """Per-generation VMEM budget: ~85% of capacity, capped at 100 MiB."""
    try:
        cap = getattr(pltpu.get_tpu_info(), "vmem_capacity_bytes", None)
    except Exception:
        cap = None
    if not cap:
        return 48 * 1024 * 1024
    return int(min(0.85 * cap, 100 * 1024 * 1024))


def _const_spec(shape, single_buffer):
    """BlockSpec for grid-invariant operands; single-buffered when supported."""
    index_map = lambda n: (0, 0)
    if single_buffer and hasattr(pl, "Buffered"):
        try:
            return pl.BlockSpec(shape, index_map, pipeline_mode=pl.Buffered(1))
        except TypeError:
            pass
    return pl.BlockSpec(shape, index_map)


def _build_and_run(x_nchw, w1, b1, w2, b2, single_buffer_consts):
    N, C, H, W = x_nchw.shape
    HW = H * W
    P = W + 1
    Ls = HW + 2 * P
    dtype = x_nchw.dtype
    itemsize = jnp.dtype(dtype).itemsize

    Cp = _round_up(max(C, 8), 8)        # full f32 sublane group
    chunk = _pick_chunk(HW)
    nb = _pick_nb(N, C, HW, itemsize)
    grid = (N // nb,)

    # Flatten spatial dims onto the lane axis (contiguous reshape, no HBM pass).
    x_flat = x_nchw.reshape(N, C, HW)

    # im2col weights: (Cout, Cin, 3, 3) -> (Cp, 9*Cp), tap-major/channel-minor,
    # channels zero-padded to Cp (so padded h rows come out exactly 0).
    def im2col_w(w):
        wt = jnp.transpose(w, (0, 2, 3, 1)).astype(jnp.float32)   # (Co, ky, kx, Ci)
        wt = jnp.pad(wt, ((0, Cp - C), (0, 0), (0, 0), (0, Cp - C)))
        return wt.reshape(Cp, 9 * Cp)

    w1m = im2col_w(w1)
    w2m = im2col_w(w2)
    b1m = jnp.pad(b1.astype(jnp.float32), (0, Cp - C)).reshape(Cp, 1)
    b2m = jnp.pad(b2.astype(jnp.float32), (0, Cp - C)).reshape(Cp, 1)

    # Left/right-edge lane masks implementing the horizontal zero padding.
    j = jnp.arange(HW, dtype=jnp.int32) % W
    mask2 = jnp.stack([(j != 0), (j != W - 1)]).astype(jnp.float32)   # (2, HW)

    kernel = functools.partial(_basic_conv_kernel, H=H, W=W, C=C, Cp=Cp,
                               nb=nb, chunk=chunk)

    flops = 2 * 2 * N * HW * 9 * C * C                     # two 3x3 convs
    bytes_accessed = (2 * N * C * HW * itemsize            # x in + out
                      + 2 * Cp * 9 * Cp * 4 + 2 * Cp * 4 + 2 * HW * 4)

    in_specs = [
        pl.BlockSpec((nb, C, HW), lambda n: (n, 0, 0)),
        _const_spec((2, HW), single_buffer_consts),
        _const_spec((Cp, 9 * Cp), single_buffer_consts),
        _const_spec((Cp, 1), single_buffer_consts),
        _const_spec((Cp, 9 * Cp), single_buffer_consts),
        _const_spec((Cp, 1), single_buffer_consts),
    ]

    out = pl.pallas_call(
        kernel,
        out_shape=jax.ShapeDtypeStruct((N, C, HW), dtype),
        grid_spec=pltpu.PrefetchScalarGridSpec(
            num_scalar_prefetch=0,
            grid=grid,
            in_specs=in_specs,
            out_specs=pl.BlockSpec((nb, C, HW), lambda n: (n, 0, 0)),
            scratch_shapes=[pltpu.VMEM((Cp, Ls), jnp.float32),
                            pltpu.VMEM((Cp, Ls), jnp.float32)],
        ),
        compiler_params=pltpu.CompilerParams(
            dimension_semantics=("parallel",),
            vmem_limit_bytes=_vmem_limit_bytes(),
        ),
        cost_estimate=pl.CostEstimate(
            flops=flops, transcendentals=0, bytes_accessed=bytes_accessed),
    )(x_flat, mask2, w1m, b1m, w2m, b2m)

    return out.reshape(N, C, H, W)


def basic_conv_pallas(x_nchw, w1, b1, w2, b2):
    """x_nchw: (N, C, H, W); w*: (Cout, Cin, 3, 3) PyTorch layout; b*: (C,)."""
    try:
        return _build_and_run(x_nchw, w1, b1, w2, b2, single_buffer_consts=True)
    except Exception:
        # pl.Buffered(1) not supported on this JAX build: retry with default
        # (double) buffering of the tiny grid-invariant operands.
        return _build_and_run(x_nchw, w1, b1, w2, b2, single_buffer_consts=False)


def _reference(x_nchw, w1, b1, w2, b2):
    """Pure-JAX reference using lax.conv (NCHW, matches PyTorch semantics)."""
    dn = jax.lax.conv_dimension_numbers(x_nchw.shape, w1.shape,
                                        ("NCHW", "OIHW", "NCHW"))
    h = jax.lax.conv_general_dilated(x_nchw, w1, (1, 1), ((1, 1), (1, 1)),
                                     dimension_numbers=dn)
    h = jnp.maximum(h + b1.reshape(1, -1, 1, 1), 0.0)
    h = jax.lax.conv_general_dilated(h, w2, (1, 1), ((1, 1), (1, 1)),
                                     dimension_numbers=dn)
    h = jnp.maximum(h + b2.reshape(1, -1, 1, 1), 0.0)
    return x_nchw + h


if __name__ == "__main__":
    key = jax.random.PRNGKey(0)
    k_x, k_w1, k_b1, k_w2, k_b2 = jax.random.split(key, 5)

    N, C, H, W = 2, 4, 16, 16
    x = jax.random.normal(k_x, (N, C, H, W), jnp.float32)

    # Deterministic synthetic parameters (PyTorch Conv2d weight layout OIHW).
    scale = 1.0 / (C * 9) ** 0.5
    w1 = jax.random.normal(k_w1, (C, C, 3, 3), jnp.float32) * scale
    b1 = jax.random.normal(k_b1, (C,), jnp.float32) * 0.1
    w2 = jax.random.normal(k_w2, (C, C, 3, 3), jnp.float32) * scale
    b2 = jax.random.normal(k_b2, (C,), jnp.float32) * 0.1

    out = basic_conv_pallas(x, w1, b1, w2, b2)
    out = jax.block_until_ready(out)

    ref = _reference(x, w1, b1, w2, b2)
    assert out.shape == (N, C, H, W)
    err = float(jnp.max(jnp.abs(out - ref)))
    assert jnp.allclose(out, ref, atol=1e-4, rtol=1e-4), err

    print("KERNEL_OK")
</pallas_src>

<mosaic_0001>
module attributes {stable_mosaic.version = 11 : i64} {
  func.func @_basic_conv_kernel(%arg0: i32, %arg1: memref<1x4x256xf32, #tpu.memory_space<vmem>>, %arg2: memref<2x256xf32, #tpu.memory_space<vmem>>, %arg3: memref<8x72xf32, #tpu.memory_space<vmem>>, %arg4: memref<8x1xf32, #tpu.memory_space<vmem>>, %arg5: memref<8x72xf32, #tpu.memory_space<vmem>>, %arg6: memref<8x1xf32, #tpu.memory_space<vmem>>, %arg7: memref<1x4x256xf32, #tpu.memory_space<vmem>>, %arg8: memref<8x290xf32, #tpu.memory_space<vmem>>, %arg9: memref<8x290xf32, #tpu.memory_space<vmem>>) attributes {dimension_semantics = [#tpu.dimension_semantics<parallel>], iteration_bounds = array<i64: 2>, scalar_prefetch = 0 : i64, scratch_operands = 2 : i64, tpu.core_type = #tpu.core_type<tc>, window_params = [{transform_indices = @transform_0, window_bounds = array<i64: 1, 4, 256>}, {pipeline_mode = #tpu.pipeline_mode<synchronous>, transform_indices = @transform_1, window_bounds = array<i64: 2, 256>}, {pipeline_mode = #tpu.pipeline_mode<synchronous>, transform_indices = @transform_2, window_bounds = array<i64: 8, 72>}, {pipeline_mode = #tpu.pipeline_mode<synchronous>, transform_indices = @transform_3, window_bounds = array<i64: 8, 1>}, {pipeline_mode = #tpu.pipeline_mode<synchronous>, transform_indices = @transform_4, window_bounds = array<i64: 8, 72>}, {pipeline_mode = #tpu.pipeline_mode<synchronous>, transform_indices = @transform_5, window_bounds = array<i64: 8, 1>}, {transform_indices = @transform_6, window_bounds = array<i64: 1, 4, 256>}]} {
    %c0 = arith.constant 0 : index
    %c0_0 = arith.constant 0 : index
    %0 = vector.load %arg3[%c0, %c0_0] : memref<8x72xf32, #tpu.memory_space<vmem>>, vector<8x72xf32>
    %c0_1 = arith.constant 0 : index
    %c0_2 = arith.constant 0 : index
    %1 = vector.load %arg5[%c0_1, %c0_2] : memref<8x72xf32, #tpu.memory_space<vmem>>, vector<8x72xf32>
    %c0_3 = arith.constant 0 : index
    %c0_4 = arith.constant 0 : index
    %2 = vector.load %arg4[%c0_3, %c0_4] : memref<8x1xf32, #tpu.memory_space<vmem>>, vector<8x1xf32>
    %c0_5 = arith.constant 0 : index
    %c0_6 = arith.constant 0 : index
    %3 = vector.load %arg6[%c0_5, %c0_6] : memref<8x1xf32, #tpu.memory_space<vmem>>, vector<8x1xf32>
    %c0_7 = arith.constant 0 : index
    %c0_8 = arith.constant 0 : index
    %4 = vector.load %arg2[%c0_7, %c0_8] : memref<2x256xf32, #tpu.memory_space<vmem>>, vector<1x256xf32>
    %c1 = arith.constant 1 : index
    %c0_9 = arith.constant 0 : index
    %5 = vector.load %arg2[%c1, %c0_9] : memref<2x256xf32, #tpu.memory_space<vmem>>, vector<1x256xf32>
    %cst = arith.constant 0.000000e+00 : f32
    %6 = vector.broadcast %cst : f32 to vector<8x290xf32>
    %c0_10 = arith.constant 0 : index
    %c0_11 = arith.constant 0 : index
    %7 = vector.load %arg8[%c0_10, %c0_11] : memref<8x290xf32, #tpu.memory_space<vmem>>, vector<8x290xf32>
    tpu.vector_store %arg8[%c0_10, %c0_11], %6 {strides = array<i32>} : memref<8x290xf32, #tpu.memory_space<vmem>>, vector<8x290xf32>,
    %c0_12 = arith.constant 0 : index
    %c0_13 = arith.constant 0 : index
    %c0_14 = arith.constant 0 : index
    %8 = vector.load %arg1[%c0_12, %c0_13, %c0_14] : memref<1x4x256xf32, #tpu.memory_space<vmem>>, vector<1x4x256xf32>
    %9 = vector.shape_cast %8 : vector<1x4x256xf32> to vector<4x256xf32>
    %c0_15 = arith.constant 0 : index
    %c17 = arith.constant 17 : index
    %10 = vector.load %arg8[%c0_15, %c17] : memref<8x290xf32, #tpu.memory_space<vmem>>, vector<4x256xf32>
    tpu.vector_store %arg8[%c0_15, %c17], %9 {strides = array<i32>} : memref<8x290xf32, #tpu.memory_space<vmem>>, vector<4x256xf32>,
    %cst_16 = arith.constant 0.000000e+00 : f32
    %11 = vector.broadcast %cst_16 : f32 to vector<8x290xf32>
    %c0_17 = arith.constant 0 : index
    %c0_18 = arith.constant 0 : index
    %12 = vector.load %arg9[%c0_17, %c0_18] : memref<8x290xf32, #tpu.memory_space<vmem>>, vector<8x290xf32>
    tpu.vector_store %arg9[%c0_17, %c0_18], %11 {strides = array<i32>} : memref<8x290xf32, #tpu.memory_space<vmem>>, vector<8x290xf32>,
    %c0_19 = arith.constant 0 : index
    %c0_20 = arith.constant 0 : index
    %13 = vector.load %arg8[%c0_19, %c0_20] : memref<8x290xf32, #tpu.memory_space<vmem>>, vector<8x256xf32>
    %14 = vector.broadcast %4 : vector<1x256xf32> to vector<8x256xf32>
    %15 = arith.mulf %13, %14 : vector<8x256xf32>
    %c0_21 = arith.constant 0 : index
    %c1_22 = arith.constant 1 : index
    %16 = vector.load %arg8[%c0_21, %c1_22] : memref<8x290xf32, #tpu.memory_space<vmem>>, vector<8x256xf32>
    %c0_23 = arith.constant 0 : index
    %c2 = arith.constant 2 : index
    %17 = vector.load %arg8[%c0_23, %c2] : memref<8x290xf32, #tpu.memory_space<vmem>>, vector<8x256xf32>
    %18 = vector.broadcast %5 : vector<1x256xf32> to vector<8x256xf32>
    %19 = arith.mulf %17, %18 : vector<8x256xf32>
    %c0_24 = arith.constant 0 : index
    %c16 = arith.constant 16 : index
    %20 = vector.load %arg8[%c0_24, %c16] : memref<8x290xf32, #tpu.memory_space<vmem>>, vector<8x256xf32>
    %21 = vector.broadcast %4 : vector<1x256xf32> to vector<8x256xf32>
    %22 = arith.mulf %20, %21 : vector<8x256xf32>
    %c0_25 = arith.constant 0 : index
    %c17_26 = arith.constant 17 : index
    %23 = vector.load %arg8[%c0_25, %c17_26] : memref<8x290xf32, #tpu.memory_space<vmem>>, vector<8x256xf32>
    %c0_27 = arith.constant 0 : index
    %c18 = arith.constant 18 : index
    %24 = vector.load %arg8[%c0_27, %c18] : memref<8x290xf32, #tpu.memory_space<vmem>>, vector<8x256xf32>
    %25 = vector.broadcast %5 : vector<1x256xf32> to vector<8x256xf32>
    %26 = arith.mulf %24, %25 : vector<8x256xf32>
    %c0_28 = arith.constant 0 : index
    %c32 = arith.constant 32 : index
    %27 = vector.load %arg8[%c0_28, %c32] : memref<8x290xf32, #tpu.memory_space<vmem>>, vector<8x256xf32>
    %28 = vector.broadcast %4 : vector<1x256xf32> to vector<8x256xf32>
    %29 = arith.mulf %27, %28 : vector<8x256xf32>
    %c0_29 = arith.constant 0 : index
    %c33 = arith.constant 33 : index
    %30 = vector.load %arg8[%c0_29, %c33] : memref<8x290xf32, #tpu.memory_space<vmem>>, vector<8x256xf32>
    %c0_30 = arith.constant 0 : index
    %c34 = arith.constant 34 : index
    %31 = vector.load %arg8[%c0_30, %c34] : memref<8x290xf32, #tpu.memory_space<vmem>>, vector<8x256xf32>
    %32 = vector.broadcast %5 : vector<1x256xf32> to vector<8x256xf32>
    %33 = arith.mulf %31, %32 : vector<8x256xf32>
    %34 = tpu.concatenate %15, %16, %19, %22, %23, %26, %29, %30, %33 in 0 : vector<8x256xf32>, vector<8x256xf32>, vector<8x256xf32>, vector<8x256xf32>, vector<8x256xf32>, vector<8x256xf32>, vector<8x256xf32>, vector<8x256xf32>, vector<8x256xf32> -> vector<72x256xf32>
    %cst_31 = arith.constant dense<0.000000e+00> : vector<8x256xf32>
    %35 = tpu.matmul %0, %34, %cst_31 {dimension_numbers = #tpu.dot_dimension_numbers<[1], [0], [0], [1], [0, 0, 1, 1], [], []>} : vector<8x72xf32>, vector<72x256xf32>, vector<8x256xf32> -> vector<8x256xf32>
    %36 = vector.broadcast %2 : vector<8x1xf32> to vector<8x256xf32>
    %37 = arith.addf %35, %36 : vector<8x256xf32>
    %cst_32 = arith.constant 0.000000e+00 : f32
    %38 = vector.broadcast %cst_32 : f32 to vector<8x256xf32>
    %39 = arith.maximumf %37, %38 : vector<8x256xf32>
    %c0_33 = arith.constant 0 : index
    %c17_34 = arith.constant 17 : index
    %40 = vector.load %arg9[%c0_33, %c17_34] : memref<8x290xf32, #tpu.memory_space<vmem>>, vector<8x256xf32>
    tpu.vector_store %arg9[%c0_33, %c17_34], %39 {strides = array<i32>} : memref<8x290xf32, #tpu.memory_space<vmem>>, vector<8x256xf32>,
    %c0_35 = arith.constant 0 : index
    %c0_36 = arith.constant 0 : index
    %41 = vector.load %arg9[%c0_35, %c0_36] : memref<8x290xf32, #tpu.memory_space<vmem>>, vector<8x256xf32>
    %42 = vector.broadcast %4 : vector<1x256xf32> to vector<8x256xf32>
    %43 = arith.mulf %41, %42 : vector<8x256xf32>
    %c0_37 = arith.constant 0 : index
    %c1_38 = arith.constant 1 : index
    %44 = vector.load %arg9[%c0_37, %c1_38] : memref<8x290xf32, #tpu.memory_space<vmem>>, vector<8x256xf32>
    %c0_39 = arith.constant 0 : index
    %c2_40 = arith.constant 2 : index
    %45 = vector.load %arg9[%c0_39, %c2_40] : memref<8x290xf32, #tpu.memory_space<vmem>>, vector<8x256xf32>
    %46 = vector.broadcast %5 : vector<1x256xf32> to vector<8x256xf32>
    %47 = arith.mulf %45, %46 : vector<8x256xf32>
    %c0_41 = arith.constant 0 : index
    %c16_42 = arith.constant 16 : index
    %48 = vector.load %arg9[%c0_41, %c16_42] : memref<8x290xf32, #tpu.memory_space<vmem>>, vector<8x256xf32>
    %49 = vector.broadcast %4 : vector<1x256xf32> to vector<8x256xf32>
    %50 = arith.mulf %48, %49 : vector<8x256xf32>
    %c0_43 = arith.constant 0 : index
    %c17_44 = arith.constant 17 : index
    %51 = vector.load %arg9[%c0_43, %c17_44] : memref<8x290xf32, #tpu.memory_space<vmem>>, vector<8x256xf32>
    %c0_45 = arith.constant 0 : index
    %c18_46 = arith.constant 18 : index
    %52 = vector.load %arg9[%c0_45, %c18_46] : memref<8x290xf32, #tpu.memory_space<vmem>>, vector<8x256xf32>
    %53 = vector.broadcast %5 : vector<1x256xf32> to vector<8x256xf32>
    %54 = arith.mulf %52, %53 : vector<8x256xf32>
    %c0_47 = arith.constant 0 : index
    %c32_48 = arith.constant 32 : index
    %55 = vector.load %arg9[%c0_47, %c32_48] : memref<8x290xf32, #tpu.memory_space<vmem>>, vector<8x256xf32>
    %56 = vector.broadcast %4 : vector<1x256xf32> to vector<8x256xf32>
    %57 = arith.mulf %55, %56 : vector<8x256xf32>
    %c0_49 = arith.constant 0 : index
    %c33_50 = arith.constant 33 : index
    %58 = vector.load %arg9[%c0_49, %c33_50] : memref<8x290xf32, #tpu.memory_space<vmem>>, vector<8x256xf32>
    %c0_51 = arith.constant 0 : index
    %c34_52 = arith.constant 34 : index
    %59 = vector.load %arg9[%c0_51, %c34_52] : memref<8x290xf32, #tpu.memory_space<vmem>>, vector<8x256xf32>
    %60 = vector.broadcast %5 : vector<1x256xf32> to vector<8x256xf32>
    %61 = arith.mulf %59, %60 : vector<8x256xf32>
    %62 = tpu.concatenate %43, %44, %47, %50, %51, %54, %57, %58, %61 in 0 : vector<8x256xf32>, vector<8x256xf32>, vector<8x256xf32>, vector<8x256xf32>, vector<8x256xf32>, vector<8x256xf32>, vector<8x256xf32>, vector<8x256xf32>, vector<8x256xf32> -> vector<72x256xf32>
    %cst_53 = arith.constant dense<0.000000e+00> : vector<8x256xf32>
    %63 = tpu.matmul %1, %62, %cst_53 {dimension_numbers = #tpu.dot_dimension_numbers<[1], [0], [0], [1], [0, 0, 1, 1], [], []>} : vector<8x72xf32>, vector<72x256xf32>, vector<8x256xf32> -> vector<8x256xf32>
    %64 = vector.broadcast %3 : vector<8x1xf32> to vector<8x256xf32>
    %65 = arith.addf %63, %64 : vector<8x256xf32>
    %cst_54 = arith.constant 0.000000e+00 : f32
    %66 = vector.broadcast %cst_54 : f32 to vector<8x256xf32>
    %67 = arith.maximumf %65, %66 : vector<8x256xf32>
    %c0_55 = arith.constant 0 : index
    %c0_56 = arith.constant 0 : index
    %c0_57 = arith.constant 0 : index
    %68 = vector.load %arg1[%c0_55, %c0_56, %c0_57] : memref<1x4x256xf32, #tpu.memory_space<vmem>>, vector<1x4x256xf32>
    %69 = vector.shape_cast %68 : vector<1x4x256xf32> to vector<4x256xf32>
    %70 = vector.extract_strided_slice %67 {offsets = [0, 0], sizes = [4, 256], strides = [1, 1]} : vector<8x256xf32> to vector<4x256xf32>
    %71 = arith.addf %69, %70 : vector<4x256xf32>
    %c0_58 = arith.constant 0 : index
    %c0_59 = arith.constant 0 : index
    %c0_60 = arith.constant 0 : index
    %72 = vector.load %arg7[%c0_58, %c0_59, %c0_60] : memref<1x4x256xf32, #tpu.memory_space<vmem>>, vector<1x4x256xf32>
    %73 = vector.shape_cast %72 : vector<1x4x256xf32> to vector<4x256xf32>
    %74 = vector.shape_cast %71 : vector<4x256xf32> to vector<1x4x256xf32>
    tpu.vector_store %arg7[%c0_58, %c0_59, %c0_60], %74 {strides = array<i32>} : memref<1x4x256xf32, #tpu.memory_space<vmem>>, vector<1x4x256xf32>,
    return
  }
  func.func @transform_0(%arg0: i32) -> (i32, i32, i32) {
    %c0_i32 = arith.constant 0 : i32
    %c0_i32_0 = arith.constant 0 : i32
    %c0_i32_1 = arith.constant 0 : i32
    return %arg0, %c0_i32, %c0_i32_0 : i32, i32, i32
  }
  func.func @transform_1(%arg0: i32) -> (i32, i32) {
    %c0_i32 = arith.constant 0 : i32
    %c0_i32_0 = arith.constant 0 : i32
    %c0_i32_1 = arith.constant 0 : i32
    return %c0_i32, %c0_i32_0 : i32, i32
  }
  func.func @transform_2(%arg0: i32) -> (i32, i32) {
    %c0_i32 = arith.constant 0 : i32
    %c0_i32_0 = arith.constant 0 : i32
    %c0_i32_1 = arith.constant 0 : i32
    return %c0_i32, %c0_i32_0 : i32, i32
  }
  func.func @transform_3(%arg0: i32) -> (i32, i32) {
    %c0_i32 = arith.constant 0 : i32
    %c0_i32_0 = arith.constant 0 : i32
    %c0_i32_1 = arith.constant 0 : i32
    return %c0_i32, %c0_i32_0 : i32, i32
  }
  func.func @transform_4(%arg0: i32) -> (i32, i32) {
    %c0_i32 = arith.constant 0 : i32
    %c0_i32_0 = arith.constant 0 : i32
    %c0_i32_1 = arith.constant 0 : i32
    return %c0_i32, %c0_i32_0 : i32, i32
  }
  func.func @transform_5(%arg0: i32) -> (i32, i32) {
    %c0_i32 = arith.constant 0 : i32
    %c0_i32_0 = arith.constant 0 : i32
    %c0_i32_1 = arith.constant 0 : i32
    return %c0_i32, %c0_i32_0 : i32, i32
  }
  func.func @transform_6(%arg0: i32) -> (i32, i32, i32) {
    %c0_i32 = arith.constant 0 : i32
    %c0_i32_0 = arith.constant 0 : i32
    %c0_i32_1 = arith.constant 0 : i32
    return %arg0, %c0_i32, %c0_i32_0 : i32, i32, i32
  }
}

module attributes {stable_mosaic.version = 11 : i64} {
  func.func @_basic_conv_kernel(%arg0: i32, %arg1: memref<1x4x256xf32, #tpu.memory_space<vmem>>, %arg2: memref<2x256xf32, #tpu.memory_space<vmem>>, %arg3: memref<8x72xf32, #tpu.memory_space<vmem>>, %arg4: memref<8x1xf32, #tpu.memory_space<vmem>>, %arg5: memref<8x72xf32, #tpu.memory_space<vmem>>, %arg6: memref<8x1xf32, #tpu.memory_space<vmem>>, %arg7: memref<1x4x256xf32, #tpu.memory_space<vmem>>, %arg8: memref<8x290xf32, #tpu.memory_space<vmem>>, %arg9: memref<8x290xf32, #tpu.memory_space<vmem>>) attributes {dimension_semantics = [#tpu.dimension_semantics<parallel>], iteration_bounds = array<i64: 2>, scalar_prefetch = 0 : i64, scratch_operands = 2 : i64, tpu.core_type = #tpu.core_type<tc>, window_params = [{transform_indices = @transform_0, window_bounds = array<i64: 1, 4, 256>}, {pipeline_mode = #tpu.pipeline_mode<synchronous>, transform_indices = @transform_1, window_bounds = array<i64: 2, 256>}, {pipeline_mode = #tpu.pipeline_mode<synchronous>, transform_indices = @transform_2, window_bounds = array<i64: 8, 72>}, {pipeline_mode = #tpu.pipeline_mode<synchronous>, transform_indices = @transform_3, window_bounds = array<i64: 8, 1>}, {pipeline_mode = #tpu.pipeline_mode<synchronous>, transform_indices = @transform_4, window_bounds = array<i64: 8, 72>}, {pipeline_mode = #tpu.pipeline_mode<synchronous>, transform_indices = @transform_5, window_bounds = array<i64: 8, 1>}, {transform_indices = @transform_6, window_bounds = array<i64: 1, 4, 256>}]} {
    %c0 = arith.constant 0 : index
    %c0_0 = arith.constant 0 : index
    %0 = vector.load %arg3[%c0, %c0_0] : memref<8x72xf32, #tpu.memory_space<vmem>>, vector<8x72xf32>
    %c0_1 = arith.constant 0 : index
    %c0_2 = arith.constant 0 : index
    %1 = vector.load %arg5[%c0_1, %c0_2] : memref<8x72xf32, #tpu.memory_space<vmem>>, vector<8x72xf32>
    %c0_3 = arith.constant 0 : index
    %c0_4 = arith.constant 0 : index
    %2 = vector.load %arg4[%c0_3, %c0_4] : memref<8x1xf32, #tpu.memory_space<vmem>>, vector<8x1xf32>
    %c0_5 = arith.constant 0 : index
    %c0_6 = arith.constant 0 : index
    %3 = vector.load %arg6[%c0_5, %c0_6] : memref<8x1xf32, #tpu.memory_space<vmem>>, vector<8x1xf32>
    %c0_7 = arith.constant 0 : index
    %c0_8 = arith.constant 0 : index
    %4 = vector.load %arg2[%c0_7, %c0_8] : memref<2x256xf32, #tpu.memory_space<vmem>>, vector<1x256xf32>
    %c1 = arith.constant 1 : index
    %c0_9 = arith.constant 0 : index
    %5 = vector.load %arg2[%c1, %c0_9] : memref<2x256xf32, #tpu.memory_space<vmem>>, vector<1x256xf32>
    %cst = arith.constant 0.000000e+00 : f32
    %6 = vector.broadcast %cst : f32 to vector<8x290xf32>
    %c0_10 = arith.constant 0 : index
    %c0_11 = arith.constant 0 : index
    %7 = vector.load %arg8[%c0_10, %c0_11] : memref<8x290xf32, #tpu.memory_space<vmem>>, vector<8x290xf32>
    tpu.vector_store %arg8[%c0_10, %c0_11], %6 {strides = array<i32>} : memref<8x290xf32, #tpu.memory_space<vmem>>, vector<8x290xf32>,
    %c0_12 = arith.constant 0 : index
    %c0_13 = arith.constant 0 : index
    %c0_14 = arith.constant 0 : index
    %8 = vector.load %arg1[%c0_12, %c0_13, %c0_14] : memref<1x4x256xf32, #tpu.memory_space<vmem>>, vector<1x4x256xf32>
    %9 = vector.shape_cast %8 : vector<1x4x256xf32> to vector<4x256xf32>
    %c0_15 = arith.constant 0 : index
    %c17 = arith.constant 17 : index
    %10 = vector.load %arg8[%c0_15, %c17] : memref<8x290xf32, #tpu.memory_space<vmem>>, vector<4x256xf32>
    tpu.vector_store %arg8[%c0_15, %c17], %9 {strides = array<i32>} : memref<8x290xf32, #tpu.memory_space<vmem>>, vector<4x256xf32>,
    %cst_16 = arith.constant 0.000000e+00 : f32
    %11 = vector.broadcast %cst_16 : f32 to vector<8x290xf32>
    %c0_17 = arith.constant 0 : index
    %c0_18 = arith.constant 0 : index
    %12 = vector.load %arg9[%c0_17, %c0_18] : memref<8x290xf32, #tpu.memory_space<vmem>>, vector<8x290xf32>
    tpu.vector_store %arg9[%c0_17, %c0_18], %11 {strides = array<i32>} : memref<8x290xf32, #tpu.memory_space<vmem>>, vector<8x290xf32>,
    %c0_19 = arith.constant 0 : index
    %c0_20 = arith.constant 0 : index
    %13 = vector.load %arg8[%c0_19, %c0_20] : memref<8x290xf32, #tpu.memory_space<vmem>>, vector<8x256xf32>
    %14 = vector.broadcast %4 : vector<1x256xf32> to vector<8x256xf32>
    %15 = arith.mulf %13, %14 : vector<8x256xf32>
    %c0_21 = arith.constant 0 : index
    %c1_22 = arith.constant 1 : index
    %16 = vector.load %arg8[%c0_21, %c1_22] : memref<8x290xf32, #tpu.memory_space<vmem>>, vector<8x256xf32>
    %c0_23 = arith.constant 0 : index
    %c2 = arith.constant 2 : index
    %17 = vector.load %arg8[%c0_23, %c2] : memref<8x290xf32, #tpu.memory_space<vmem>>, vector<8x256xf32>
    %18 = vector.broadcast %5 : vector<1x256xf32> to vector<8x256xf32>
    %19 = arith.mulf %17, %18 : vector<8x256xf32>
    %c0_24 = arith.constant 0 : index
    %c16 = arith.constant 16 : index
    %20 = vector.load %arg8[%c0_24, %c16] : memref<8x290xf32, #tpu.memory_space<vmem>>, vector<8x256xf32>
    %21 = vector.broadcast %4 : vector<1x256xf32> to vector<8x256xf32>
    %22 = arith.mulf %20, %21 : vector<8x256xf32>
    %c0_25 = arith.constant 0 : index
    %c17_26 = arith.constant 17 : index
    %23 = vector.load %arg8[%c0_25, %c17_26] : memref<8x290xf32, #tpu.memory_space<vmem>>, vector<8x256xf32>
    %c0_27 = arith.constant 0 : index
    %c18 = arith.constant 18 : index
    %24 = vector.load %arg8[%c0_27, %c18] : memref<8x290xf32, #tpu.memory_space<vmem>>, vector<8x256xf32>
    %25 = vector.broadcast %5 : vector<1x256xf32> to vector<8x256xf32>
    %26 = arith.mulf %24, %25 : vector<8x256xf32>
    %c0_28 = arith.constant 0 : index
    %c32 = arith.constant 32 : index
    %27 = vector.load %arg8[%c0_28, %c32] : memref<8x290xf32, #tpu.memory_space<vmem>>, vector<8x256xf32>
    %28 = vector.broadcast %4 : vector<1x256xf32> to vector<8x256xf32>
    %29 = arith.mulf %27, %28 : vector<8x256xf32>
    %c0_29 = arith.constant 0 : index
    %c33 = arith.constant 33 : index
    %30 = vector.load %arg8[%c0_29, %c33] : memref<8x290xf32, #tpu.memory_space<vmem>>, vector<8x256xf32>
    %c0_30 = arith.constant 0 : index
    %c34 = arith.constant 34 : index
    %31 = vector.load %arg8[%c0_30, %c34] : memref<8x290xf32, #tpu.memory_space<vmem>>, vector<8x256xf32>
    %32 = vector.broadcast %5 : vector<1x256xf32> to vector<8x256xf32>
    %33 = arith.mulf %31, %32 : vector<8x256xf32>
    %34 = tpu.concatenate %15, %16, %19, %22, %23, %26, %29, %30, %33 in 0 : vector<8x256xf32>, vector<8x256xf32>, vector<8x256xf32>, vector<8x256xf32>, vector<8x256xf32>, vector<8x256xf32>, vector<8x256xf32>, vector<8x256xf32>, vector<8x256xf32> -> vector<72x256xf32>
    %cst_31 = arith.constant dense<0.000000e+00> : vector<8x256xf32>
    %35 = tpu.matmul %0, %34, %cst_31 {dimension_numbers = #tpu.dot_dimension_numbers<[1], [0], [0], [1], [0, 0, 1, 1], [], []>} : vector<8x72xf32>, vector<72x256xf32>, vector<8x256xf32> -> vector<8x256xf32>
    %36 = vector.broadcast %2 : vector<8x1xf32> to vector<8x256xf32>
    %37 = arith.addf %35, %36 : vector<8x256xf32>
    %cst_32 = arith.constant 0.000000e+00 : f32
    %38 = vector.broadcast %cst_32 : f32 to vector<8x256xf32>
    %39 = arith.maximumf %37, %38 : vector<8x256xf32>
    %c0_33 = arith.constant 0 : index
    %c17_34 = arith.constant 17 : index
    %40 = vector.load %arg9[%c0_33, %c17_34] : memref<8x290xf32, #tpu.memory_space<vmem>>, vector<8x256xf32>
    tpu.vector_store %arg9[%c0_33, %c17_34], %39 {strides = array<i32>} : memref<8x290xf32, #tpu.memory_space<vmem>>, vector<8x256xf32>,
    %c0_35 = arith.constant 0 : index
    %c0_36 = arith.constant 0 : index
    %41 = vector.load %arg9[%c0_35, %c0_36] : memref<8x290xf32, #tpu.memory_space<vmem>>, vector<8x256xf32>
    %42 = vector.broadcast %4 : vector<1x256xf32> to vector<8x256xf32>
    %43 = arith.mulf %41, %42 : vector<8x256xf32>
    %c0_37 = arith.constant 0 : index
    %c1_38 = arith.constant 1 : index
    %44 = vector.load %arg9[%c0_37, %c1_38] : memref<8x290xf32, #tpu.memory_space<vmem>>, vector<8x256xf32>
    %c0_39 = arith.constant 0 : index
    %c2_40 = arith.constant 2 : index
    %45 = vector.load %arg9[%c0_39, %c2_40] : memref<8x290xf32, #tpu.memory_space<vmem>>, vector<8x256xf32>
    %46 = vector.broadcast %5 : vector<1x256xf32> to vector<8x256xf32>
    %47 = arith.mulf %45, %46 : vector<8x256xf32>
    %c0_41 = arith.constant 0 : index
    %c16_42 = arith.constant 16 : index
    %48 = vector.load %arg9[%c0_41, %c16_42] : memref<8x290xf32, #tpu.memory_space<vmem>>, vector<8x256xf32>
    %49 = vector.broadcast %4 : vector<1x256xf32> to vector<8x256xf32>
    %50 = arith.mulf %48, %49 : vector<8x256xf32>
    %c0_43 = arith.constant 0 : index
    %c17_44 = arith.constant 17 : index
    %51 = vector.load %arg9[%c0_43, %c17_44] : memref<8x290xf32, #tpu.memory_space<vmem>>, vector<8x256xf32>
    %c0_45 = arith.constant 0 : index
    %c18_46 = arith.constant 18 : index
    %52 = vector.load %arg9[%c0_45, %c18_46] : memref<8x290xf32, #tpu.memory_space<vmem>>, vector<8x256xf32>
    %53 = vector.broadcast %5 : vector<1x256xf32> to vector<8x256xf32>
    %54 = arith.mulf %52, %53 : vector<8x256xf32>
    %c0_47 = arith.constant 0 : index
    %c32_48 = arith.constant 32 : index
    %55 = vector.load %arg9[%c0_47, %c32_48] : memref<8x290xf32, #tpu.memory_space<vmem>>, vector<8x256xf32>
    %56 = vector.broadcast %4 : vector<1x256xf32> to vector<8x256xf32>
    %57 = arith.mulf %55, %56 : vector<8x256xf32>
    %c0_49 = arith.constant 0 : index
    %c33_50 = arith.constant 33 : index
    %58 = vector.load %arg9[%c0_49, %c33_50] : memref<8x290xf32, #tpu.memory_space<vmem>>, vector<8x256xf32>
    %c0_51 = arith.constant 0 : index
    %c34_52 = arith.constant 34 : index
    %59 = vector.load %arg9[%c0_51, %c34_52] : memref<8x290xf32, #tpu.memory_space<vmem>>, vector<8x256xf32>
    %60 = vector.broadcast %5 : vector<1x256xf32> to vector<8x256xf32>
    %61 = arith.mulf %59, %60 : vector<8x256xf32>
    %62 = tpu.concatenate %43, %44, %47, %50, %51, %54, %57, %58, %61 in 0 : vector<8x256xf32>, vector<8x256xf32>, vector<8x256xf32>, vector<8x256xf32>, vector<8x256xf32>, vector<8x256xf32>, vector<8x256xf32>, vector<8x256xf32>, vector<8x256xf32> -> vector<72x256xf32>
    %cst_53 = arith.constant dense<0.000000e+00> : vector<8x256xf32>
    %63 = tpu.matmul %1, %62, %cst_53 {dimension_numbers = #tpu.dot_dimension_numbers<[1], [0], [0], [1], [0, 0, 1, 1], [], []>} : vector<8x72xf32>, vector<72x256xf32>, vector<8x256xf32> -> vector<8x256xf32>
    %64 = vector.broadcast %3 : vector<8x1xf32> to vector<8x256xf32>
    %65 = arith.addf %63, %64 : vector<8x256xf32>
    %cst_54 = arith.constant 0.000000e+00 : f32
    %66 = vector.broadcast %cst_54 : f32 to vector<8x256xf32>
    %67 = arith.maximumf %65, %66 : vector<8x256xf32>
    %c0_55 = arith.constant 0 : index
    %c0_56 = arith.constant 0 : index
    %c0_57 = arith.constant 0 : index
    %68 = vector.load %arg1[%c0_55, %c0_56, %c0_57] : memref<1x4x256xf32, #tpu.memory_space<vmem>>, vector<1x4x256xf32>
    %69 = vector.shape_cast %68 : vector<1x4x256xf32> to vector<4x256xf32>
    %70 = vector.extract_strided_slice %67 {offsets = [0, 0], sizes = [4, 256], strides = [1, 1]} : vector<8x256xf32> to vector<4x256xf32>
    %71 = arith.addf %69, %70 : vector<4x256xf32>
    %c0_58 = arith.constant 0 : index
    %c0_59 = arith.constant 0 : index
    %c0_60 = arith.constant 0 : index
    %72 = vector.load %arg7[%c0_58, %c0_59, %c0_60] : memref<1x4x256xf32, #tpu.memory_space<vmem>>, vector<1x4x256xf32>
    %73 = vector.shape_cast %72 : vector<1x4x256xf32> to vector<4x256xf32>
    %74 = vector.shape_cast %71 : vector<4x256xf32> to vector<1x4x256xf32>
    tpu.vector_store %arg7[%c0_58, %c0_59, %c0_60], %74 {strides = array<i32>} : memref<1x4x256xf32, #tpu.memory_space<vmem>>, vector<1x4x256xf32>,
    return
  }
  func.func @transform_0(%arg0: i32) -> (i32, i32, i32) {
    %c0_i32 = arith.constant 0 : i32
    %c0_i32_0 = arith.constant 0 : i32
    %c0_i32_1 = arith.constant 0 : i32
    return %arg0, %c0_i32, %c0_i32_0 : i32, i32, i32
  }
  func.func @transform_1(%arg0: i32) -> (i32, i32) {
    %c0_i32 = arith.constant 0 : i32
    %c0_i32_0 = arith.constant 0 : i32
    %c0_i32_1 = arith.constant 0 : i32
    return %c0_i32, %c0_i32_0 : i32, i32
  }
  func.func @transform_2(%arg0: i32) -> (i32, i32) {
    %c0_i32 = arith.constant 0 : i32
    %c0_i32_0 = arith.constant 0 : i32
    %c0_i32_1 = arith.constant 0 : i32
    return %c0_i32, %c0_i32_0 : i32, i32
  }
  func.func @transform_3(%arg0: i32) -> (i32, i32) {
    %c0_i32 = arith.constant 0 : i32
    %c0_i32_0 = arith.constant 0 : i32
    %c0_i32_1 = arith.constant 0 : i32
    return %c0_i32, %c0_i32_0 : i32, i32
  }
  func.func @transform_4(%arg0: i32) -> (i32, i32) {
    %c0_i32 = arith.constant 0 : i32
    %c0_i32_0 = arith.constant 0 : i32
    %c0_i32_1 = arith.constant 0 : i32
    return %c0_i32, %c0_i32_0 : i32, i32
  }
  func.func @transform_5(%arg0: i32) -> (i32, i32) {
    %c0_i32 = arith.constant 0 : i32
    %c0_i32_0 = arith.constant 0 : i32
    %c0_i32_1 = arith.constant 0 : i32
    return %c0_i32, %c0_i32_0 : i32, i32
  }
  func.func @transform_6(%arg0: i32) -> (i32, i32, i32) {
    %c0_i32 = arith.constant 0 : i32
    %c0_i32_0 = arith.constant 0 : i32
    %c0_i32_1 = arith.constant 0 : i32
    return %arg0, %c0_i32, %c0_i32_0 : i32, i32, i32
  }
}

</mosaic_0001>

<llo_original>
// kernel: tpu_custom_call.1
$region0: #{tpu_custom_call.1}
  #allocation0 [shape = 'u32[]', space=smem, size = 0x4, offset = 0x4, fixed_abs, tag = 'smem constant byte address 0x4 - core index']
  #allocation1 [shape = 'u32[72,128]{1,0:T(1,128)}', space=vmem, size = 0x9000, scoped, tag = 'internal scratch']
  #allocation2 [shape = 'f32[8,290]{1,0:T(8,128)}', space=vmem, size = 0x3000, scoped, tag = 'scratch operand']
  #allocation3 [shape = 'f32[8,290]{1,0:T(8,128)}', space=vmem, size = 0x3000, scoped, tag = 'scratch operand']
  %s0 = inlined_call_operand.vmem [shape: f32[2,4,256], index: 0, kind: input, shape index: {}]
  %s1 = inlined_call_operand.hbm [shape: f32[2,256], index: 1, kind: input, shape index: {}]
  %s2 = inlined_call_operand.hbm [shape: f32[8,72], index: 2, kind: input, shape index: {}]
  %s3 = inlined_call_operand.vmem [shape: f32[8,1], index: 3, kind: input, shape index: {}]
  %s4 = inlined_call_operand.hbm [shape: f32[8,72], index: 4, kind: input, shape index: {}]
  %s5 = inlined_call_operand.vmem [shape: f32[8,1], index: 5, kind: input, shape index: {}]
  %s6 = inlined_call_operand.hbm [shape: f32[2,4,256], index: 6, kind: output, shape index: {}]
  %s7 = sld [smem:[#allocation0]]
  $region69: #{tpu_custom_call.1} parent=0
    _
  %s9 = ssub.s32 1, %s7
  %s10 = scalar_select 0, %s9, %s7
  $region1: #{tpu_custom_call.1} parent=0
    #allocation4 [shape = 'u8[2048]{0}', space=vmem, size = 0x800, scoped, tag = 'input window, operand 1, single buffered']
    #allocation5 [shape = 's32[2]{0}', space=sflag, size = 0x8, scoped, tag = 'scoped memory for tpu_custom_call.1']
    #allocation6 [shape = 's32[2]{0}', space=sflag, size = 0x8, scoped, tag = 'scoped memory for tpu_custom_call.1']
    #allocation7 [shape = 'u8[4096]{0}', space=vmem, size = 0x1000, scoped, tag = 'input window, operand 2, single buffered']
    #allocation8 [shape = 's32[1]{0}', space=sflag, size = 0x4, scoped, tag = 'scoped memory for tpu_custom_call.1']
    #allocation9 [shape = 'u8[4096]{0}', space=vmem, size = 0x1000, scoped, tag = 'input window, operand 4, single buffered']
    #allocation10 [shape = 'u8[8192]{0}', space=vmem, size = 0x2000, scoped, tag = 'output window, operand 0']
    %11 = vsyncpa [#allocation5], 0
    %12 = vsyncpa [#allocation8], 0
    %13 = vsyncpa [#allocation6], 0
    %s14 = scalar_lea.sflag [#allocation6], 1
    %15 = vsyncpa %s14, 0
    loop: start=0, step=1, limit=4
    $region2: #{tpu_custom_call.1} parent=1 // loop_pre_header
      _
    $region3: #{tpu_custom_call.1} parent=1 // loop_header
      %s17 = sphi 0, %s21
      %p18 = scmp.ge.s32.totalorder %s17, 4
      %s27 = sphi 0, %s29
      %s30 = sphi 0, %s27
      %s31 = sphi 0, %s30
      %s47 = sphi 0, %s31
      %s51 = sphi 0, %s51
      %s53 = sphi 0, %s51
      %s54 = sphi 0, %s53
      %s68 = sphi 0, %s54
      %s72 = sphi 0, %s72
      %s74 = sphi 0, %s72
      %s75 = sphi 0, %s74
      %s89 = sphi 0, %s75
      %s93 = sphi 0, %s93
      %s95 = sphi 0, %s93
      %s96 = sphi 0, %s95
      %s110 = sphi 0, %s96
      %s114 = sphi 0, %s114
      %s116 = sphi 0, %s114
      %s117 = sphi 0, %s116
      %s131 = sphi 0, %s117
      %s135 = sphi 0, %s135
      %s137 = sphi 0, %s135
      %s138 = sphi 0, %s137
      %s152 = sphi 0, %s138
      %s158 = sphi 0, %s160
      %s161 = sphi 0, %s158
      %s162 = sphi 0, %s161
      %s178 = sphi 0, %s162
    $region4: #{tpu_custom_call.1} parent=1 // loop_header_branch
      %20 = sbr.rel (%p18) target = $region8
    $region5: #{tpu_custom_call.1} parent=1 // loop_body
      %s22 = ssub.s32 %s17, 1
      %s23 = ssub.s32 %s17, 2
      %s24 = sadd.s32 %s17, 1
      %s25 = ssub.s32 %s17, %s24
      %p26 = scmp.eq.s32.totalorder %s25, 0
      %s28 = sadd.s32 %s27, 1
      %s29 = scalar_select %p26, %s27, %s28
      %p32 = pneg %p26
      %p33 = scmp.eq.s32.totalorder %s17, 1
      %p34 = por %p32, %p33
      %p35 = scmp.ne.s32.totalorder %s27, %s30
      %p36 = scmp.eq.s32.totalorder %s17, 0
      %p37 = por %p35, %p36
      %p38 = scmp.ne.s32.totalorder %s27, %s30
      %p39 = scmp.eq.s32.totalorder %s22, 1
      %p40 = por %p38, %p39
      %p41 = scmp.ne.s32.totalorder %s30, %s31
      %p42 = scmp.eq.s32.totalorder %s22, 0
      %p43 = por %p41, %p42
      %p44 = scmp.ne.s32.totalorder %s30, %s31
      %p45 = scmp.eq.s32.totalorder %s23, 1
      %p46 = por %p44, %p45
      %p48 = scmp.ne.s32.totalorder %s31, %s47
      %p49 = scmp.eq.s32.totalorder %s23, 0
      %p50 = por %p48, %p49
      %s52 = sadd.s32 %s51, 1
      %p55 = scmp.eq.s32.totalorder %s17, 1
      %p56 = scmp.ne.s32.totalorder %s51, %s53
      %p57 = scmp.eq.s32.totalorder %s17, 0
      %p58 = por %p56, %p57
      %p59 = scmp.ne.s32.totalorder %s51, %s53
      %p60 = scmp.eq.s32.totalorder %s22, 1
      %p61 = por %p59, %p60
      %p62 = scmp.ne.s32.totalorder %s53, %s54
      %p63 = scmp.eq.s32.totalorder %s22, 0
      %p64 = por %p62, %p63
      %p65 = scmp.ne.s32.totalorder %s53, %s54
      %p66 = scmp.eq.s32.totalorder %s23, 1
      %p67 = por %p65, %p66
      %p69 = scmp.ne.s32.totalorder %s54, %s68
      %p70 = scmp.eq.s32.totalorder %s23, 0
      %p71 = por %p69, %p70
      %s73 = sadd.s32 %s72, 1
      %p76 = scmp.eq.s32.totalorder %s17, 1
      %p77 = scmp.ne.s32.totalorder %s72, %s74
      %p78 = scmp.eq.s32.totalorder %s17, 0
      %p79 = por %p77, %p78
      %p80 = scmp.ne.s32.totalorder %s72, %s74
      %p81 = scmp.eq.s32.totalorder %s22, 1
      %p82 = por %p80, %p81
      %p83 = scmp.ne.s32.totalorder %s74, %s75
      %p84 = scmp.eq.s32.totalorder %s22, 0
      %p85 = por %p83, %p84
      %p86 = scmp.ne.s32.totalorder %s74, %s75
      %p87 = scmp.eq.s32.totalorder %s23, 1
      %p88 = por %p86, %p87
      %p90 = scmp.ne.s32.totalorder %s75, %s89
      %p91 = scmp.eq.s32.totalorder %s23, 0
      %p92 = por %p90, %p91
      %s94 = sadd.s32 %s93, 1
      %p97 = scmp.eq.s32.totalorder %s17, 1
      %p98 = scmp.ne.s32.totalorder %s93, %s95
      %p99 = scmp.eq.s32.totalorder %s17, 0
      %p100 = por %p98, %p99
      %p101 = scmp.ne.s32.totalorder %s93, %s95
      %p102 = scmp.eq.s32.totalorder %s22, 1
      %p103 = por %p101, %p102
      %p104 = scmp.ne.s32.totalorder %s95, %s96
      %p105 = scmp.eq.s32.totalorder %s22, 0
      %p106 = por %p104, %p105
      %p107 = scmp.ne.s32.totalorder %s95, %s96
      %p108 = scmp.eq.s32.totalorder %s23, 1
      %p109 = por %p107, %p108
      %p111 = scmp.ne.s32.totalorder %s96, %s110
      %p112 = scmp.eq.s32.totalorder %s23, 0
      %p113 = por %p111, %p112
      %s115 = sadd.s32 %s114, 1
      %p118 = scmp.eq.s32.totalorder %s17, 1
      %p119 = scmp.ne.s32.totalorder %s114, %s116
      %p120 = scmp.eq.s32.totalorder %s17, 0
      %p121 = por %p119, %p120
      %p122 = scmp.ne.s32.totalorder %s114, %s116
      %p123 = scmp.eq.s32.totalorder %s22, 1
      %p124 = por %p122, %p123
      %p125 = scmp.ne.s32.totalorder %s116, %s117
      %p126 = scmp.eq.s32.totalorder %s22, 0
      %p127 = por %p125, %p126
      %p128 = scmp.ne.s32.totalorder %s116, %s117
      %p129 = scmp.eq.s32.totalorder %s23, 1
      %p130 = por %p128, %p129
      %p132 = scmp.ne.s32.totalorder %s117, %s131
      %p133 = scmp.eq.s32.totalorder %s23, 0
      %p134 = por %p132, %p133
      %s136 = sadd.s32 %s135, 1
      %p139 = scmp.eq.s32.totalorder %s17, 1
      %p140 = scmp.ne.s32.totalorder %s135, %s137
      %p141 = scmp.eq.s32.totalorder %s17, 0
      %p142 = por %p140, %p141
      %p143 = scmp.ne.s32.totalorder %s135, %s137
      %p144 = scmp.eq.s32.totalorder %s22, 1
      %p145 = por %p143, %p144
      %p146 = scmp.ne.s32.totalorder %s137, %s138
      %p147 = scmp.eq.s32.totalorder %s22, 0
      %p148 = por %p146, %p147
      %p149 = scmp.ne.s32.totalorder %s137, %s138
      %p150 = scmp.eq.s32.totalorder %s23, 1
      %p151 = por %p149, %p150
      %p153 = scmp.ne.s32.totalorder %s138, %s152
      %p154 = scmp.eq.s32.totalorder %s23, 0
      %p155 = por %p153, %p154
      %s156 = ssub.s32 %s17, %s24
      %p157 = scmp.eq.s32.totalorder %s156, 0
      %s159 = sadd.s32 %s158, 1
      %s160 = scalar_select %p157, %s158, %s159
      %p163 = pneg %p157
      %p164 = scmp.eq.s32.totalorder %s17, 1
      %p165 = por %p163, %p164
      %p166 = scmp.ne.s32.totalorder %s158, %s161
      %p167 = scmp.eq.s32.totalorder %s17, 0
      %p168 = por %p166, %p167
      %p169 = scmp.ne.s32.totalorder %s158, %s161
      %p170 = scmp.eq.s32.totalorder %s22, 1
      %p171 = por %p169, %p170
      %p172 = scmp.ne.s32.totalorder %s161, %s162
      %p173 = scmp.eq.s32.totalorder %s22, 0
      %p174 = por %p172, %p173
      %p175 = scmp.ne.s32.totalorder %s161, %s162
      %p176 = scmp.eq.s32.totalorder %s23, 1
      %p177 = por %p175, %p176
      %p179 = scmp.ne.s32.totalorder %s162, %s178
      %p180 = scmp.eq.s32.totalorder %s23, 0
      %p181 = por %p179, %p180
      %p182 = scmp.le.s32.totalorder 1, %s17
      %p183 = scmp.lt.s32.totalorder %s17, 3
      %p184 = pnand %p182, %p183
      %p185 = pneg %p184
      // Predicated region
      $region9: #{tpu_custom_call.1} parent=5 // pred_check
        _
      $region10: #{tpu_custom_call.1} parent=5 // pred_check_branch
        %187 = sbr.rel (%p184) target = $region12
      $region11: #{tpu_custom_call.1} parent=5 // pred_region
        %s188 = ssub.s32 %s17, 1
        // Predicated region
        $region13: #{tpu_custom_call.1} parent=11 // pred_check
          %p189 = pneg %p64
        $region14: #{tpu_custom_call.1} parent=11 // pred_check_branch
          %191 = sbr.rel (%p189) target = $region16
        $region15: #{tpu_custom_call.1} parent=11 // pred_region
          %193 = vsyncadd [#allocation5], 0
          %s195 = sshll.u32 %s1, 4
          %s196 = int_to_ptr.hbm [resolvable:$true] %s195
          %s197 = sshll.u32 [#allocation4], 4
          %s198 = int_to_ptr.vmem [resolvable:$true] %s197
          %200 = dma.hbm_to_vmem [thread:$0]  %s196, 64, %s198, [#allocation5]
        $region16: #{tpu_custom_call.1} parent=11 // pred_fallthru
          _
        // Predicated region
        $region17: #{tpu_custom_call.1} parent=11 // pred_check
          %p201 = pneg %p85
        $region18: #{tpu_custom_call.1} parent=11 // pred_check_branch
          %203 = sbr.rel (%p201) target = $region20
        $region19: #{tpu_custom_call.1} parent=11 // pred_region
          %205 = vsyncadd [#allocation8], 0
          %s207 = sshll.u32 %s2, 4
          %s208 = int_to_ptr.hbm [resolvable:$true] %s207
          %s209 = sshll.u32 [#allocation7], 4
          %s210 = int_to_ptr.vmem [resolvable:$true] %s209
          %212 = dma.hbm_to_vmem [thread:$0]  %s208, 128, %s210, [#allocation8]
        $region20: #{tpu_custom_call.1} parent=11 // pred_fallthru
          _
        // Predicated region
        $region21: #{tpu_custom_call.1} parent=11 // pred_check
          %p213 = pneg %p106
        $region22: #{tpu_custom_call.1} parent=11 // pred_check_branch
          %215 = sbr.rel (%p213) target = $region24
        $region23: #{tpu_custom_call.1} parent=11 // pred_region
          _
        $region24: #{tpu_custom_call.1} parent=11 // pred_fallthru
          _
        // Predicated region
        $region25: #{tpu_custom_call.1} parent=11 // pred_check
          %p216 = pneg %p127
        $region26: #{tpu_custom_call.1} parent=11 // pred_check_branch
          %218 = sbr.rel (%p216) target = $region28
        $region27: #{tpu_custom_call.1} parent=11 // pred_region
          %220 = vsyncadd [#allocation8], 0
          %s222 = sshll.u32 %s4, 4
          %s223 = int_to_ptr.hbm [resolvable:$true] %s222
          %s224 = sshll.u32 [#allocation9], 4
          %s225 = int_to_ptr.vmem [resolvable:$true] %s224
          %227 = dma.hbm_to_vmem [thread:$0]  %s223, 128, %s225, [#allocation8]
        $region28: #{tpu_custom_call.1} parent=11 // pred_fallthru
          _
        // Predicated region
        $region29: #{tpu_custom_call.1} parent=11 // pred_check
          %p228 = pneg %p148
        $region30: #{tpu_custom_call.1} parent=11 // pred_check_branch
          %230 = sbr.rel (%p228) target = $region32
        $region31: #{tpu_custom_call.1} parent=11 // pred_region
          _
        $region32: #{tpu_custom_call.1} parent=11 // pred_fallthru
          _
      $region12: #{tpu_custom_call.1} parent=5 // pred_fallthru
        _
      %p231 = scmp.lt.s32.totalorder %s17, 2
      // Predicated region
      $region33: #{tpu_custom_call.1} parent=5 // pred_check
        %p232 = pneg %p231
      $region34: #{tpu_custom_call.1} parent=5 // pred_check_branch
        %234 = sbr.rel (%p232) target = $region36
      $region35: #{tpu_custom_call.1} parent=5 // pred_region
        // Predicated region
        $region37: #{tpu_custom_call.1} parent=35 // pred_check
          %p235 = pneg %p37
        $region38: #{tpu_custom_call.1} parent=35 // pred_check_branch
          %237 = sbr.rel (%p235) target = $region40
        $region39: #{tpu_custom_call.1} parent=35 // pred_region
          %p238 = scmp.lt.s32.totalorder %s17, 1
          %s239 = scalar_select %p238, %s17, 1
          %s240 = smul.addr %s239, 2
          %s241 = smul.addr %s240, 4
          %s242 = scalar_lea.vmem %s0, %s241
        $region40: #{tpu_custom_call.1} parent=35 // pred_fallthru
          _
      $region36: #{tpu_custom_call.1} parent=5 // pred_fallthru
        _
      %p243 = scmp.le.s32.totalorder 1, %s17
      %p244 = scmp.lt.s32.totalorder %s17, 3
      %p245 = pnand %p243, %p244
      %p246 = pneg %p245
      // Predicated region
      $region41: #{tpu_custom_call.1} parent=5 // pred_check
        _
      $region42: #{tpu_custom_call.1} parent=5 // pred_check_branch
        %248 = sbr.rel (%p245) target = $region44
      $region43: #{tpu_custom_call.1} parent=5 // pred_region
        %s249 = ssub.s32 %s17, 1
        // Predicated region
        $region45: #{tpu_custom_call.1} parent=43 // pred_check
          %p250 = pneg %p64
        $region46: #{tpu_custom_call.1} parent=43 // pred_check_branch
          %252 = sbr.rel (%p250) target = $region48
        $region47: #{tpu_custom_call.1} parent=43 // pred_region
          %254 = dma.done [#allocation5], 64
        $region48: #{tpu_custom_call.1} parent=43 // pred_fallthru
          _
        // Predicated region
        $region49: #{tpu_custom_call.1} parent=43 // pred_check
          %p255 = pneg %p85
        $region50: #{tpu_custom_call.1} parent=43 // pred_check_branch
          %257 = sbr.rel (%p255) target = $region52
        $region51: #{tpu_custom_call.1} parent=43 // pred_region
          %259 = dma.done [#allocation8], 128
        $region52: #{tpu_custom_call.1} parent=43 // pred_fallthru
          _
        // Predicated region
        $region53: #{tpu_custom_call.1} parent=43 // pred_check
          %p260 = pneg %p127
        $region54: #{tpu_custom_call.1} parent=43 // pred_check_branch
          %262 = sbr.rel (%p260) target = $region56
        $region55: #{tpu_custom_call.1} parent=43 // pred_region
          %264 = dma.done [#allocation8], 128
        $region56: #{tpu_custom_call.1} parent=43 // pred_fallthru
          _
        %p265 = scmp.lt.s32.totalorder %s22, 1
        %s266 = scalar_select %p265, %s22, 1
        %s267 = smul.addr %s266, 2
        %s268 = smul.addr %s267, 4
        %s269 = scalar_lea.vmem %s0, %s268
        %p270 = pneg %p43
        %p271 = pneg %p40
        %p272 = pneg %p64
        %p273 = pneg %p61
        %p274 = pneg %p85
        %p275 = pneg %p82
        %p276 = pneg %p106
        %p277 = pneg %p103
        %p278 = pneg %p127
        %p279 = pneg %p124
        %p280 = pneg %p148
        %p281 = pneg %p145
        %p282 = pneg %p174
        %p283 = pneg %p171
        %s284 = sand.u32 %s161, 1
        %s285 = scalar_lea.sflag [#allocation6], %s284
        %s286 = sand.u32 %s161, 1
        %s287 = smul.addr %s286, 8
        %s288 = scalar_lea.vmem [#allocation10], %s287
        %p289 = scmp.lt.s32.totalorder %s22, 1
        %s290 = scalar_select %p289, %s22, 1
        %s291 = smul.addr %s290, 2
        %s292 = smul.addr %s291, 4
        %s293 = scalar_lea.vmem %s0, %s292
        %v294 = vld [vmem:[#allocation7] sm:$0xff]
        %v295 = vld [vmem:[#allocation9] sm:$0xff]
        %v296 = vld [vmem:[%s3] sm:$0xff]
        %v297 = vld [vmem:[%s5] sm:$0xff]
        %v298 = vld [vmem:[#allocation4] ss:$2 sm:$0x3]
        %s299 = scalar_lea.vmem [#allocation4], 1
        %v300 = vld [vmem:[%s299] ss:$2 sm:$0x3]
        %301 = vst [vmem:[#allocation2] sm:$0xff] 0.0
        %302 = vst [vmem:[#allocation2 + $0x8] sm:$0xff] 0.0
        %vm303 = vcmask 277504
        %304 = vst.msk [vmem:[#allocation2 + $0x10] sm:$0xff] %vm303, 0.0
        %v305 = vld [vmem:[%s293] sm:$0xff]
        %307 = vst [vmem:[#allocation1] ss:$2 sm:$0xff] %v305
        %v308 = vld.sshfl [vmem:[#allocation1] sm:$0xff pattern:$0x75316420]
        %v309 = vld.sshfl [vmem:[#allocation1 + $0x8] sm:$0xff pattern:$0x75316420]
        %310 = vrot.lane.b32.xlu0 %v308, 17
        %v311 = vpop.permute.xlu0 %310
        %312 = vrot.lane.b32.xlu0 %v309, 17
        %v313 = vpop.permute.xlu0 %312
        %vm314 = vcmask 138240
        %v315 = vsel %vm314, %v311, %v313
        %vm319 = vcmask 1043592
        %320 = vst.msk [vmem:[#allocation2] sm:$0xf] %vm319, %v311
        %321 = vst [vmem:[#allocation2 + $0x8] sm:$0xf] %v315
        %vm322 = vcmask 134144
        %323 = vst.msk [vmem:[#allocation2 + $0x10] sm:$0xf] %vm322, %v313
        %324 = vst [vmem:[#allocation3] sm:$0xff] 0.0
        %325 = vst [vmem:[#allocation3 + $0x8] sm:$0xff] 0.0
        %326 = vst.msk [vmem:[#allocation3 + $0x10] sm:$0xff] %vm303, 0.0
        %v327 = vld [vmem:[#allocation2] sm:$0xff]
        %v328 = vld [vmem:[#allocation2 + $0x8] sm:$0xff]
        %v330 = vperm.slane %v298, 0
        %v331 = vperm.slane %v298, 1
        %v334 = vmul.f32 %v327, %v330
        %v335 = vmul.f32 %v328, %v331
        %v336 = vld [vmem:[#allocation2 + $0x10] sm:$0xff]
        %v338 = vperm.slane %v300, 0
        %v339 = vperm.slane %v300, 1
        %340 = vrot.lane.b32.xlu0 %v338, 2
        %v341 = vpop.permute.xlu0 %340
        %342 = vrot.lane.b32.xlu0 %v339, 2
        %v343 = vpop.permute.xlu0 %342
        %vm344 = vcmask 15360
        %v345 = vsel %vm344, %v341, %v343
        %v349 = vmul.f32 %v327, %v341
        %v350 = vmul.f32 %v328, %v345
        %v351 = vmul.f32 %v336, %v343
        %352 = vrot.lane.b32.xlu0 %v330, 16
        %v353 = vpop.permute.xlu0 %352
        %354 = vrot.lane.b32.xlu0 %v331, 16
        %v355 = vpop.permute.xlu0 %354
        %vm356 = vcmask 130048
        %v357 = vsel %vm356, %v353, %v355
        %v361 = vmul.f32 %v327, %v353
        %v362 = vmul.f32 %v328, %v357
        %v363 = vmul.f32 %v336, %v355
        %364 = vrot.lane.b32.xlu0 %v338, 18
        %v365 = vpop.permute.xlu0 %364
        %366 = vrot.lane.b32.xlu0 %v339, 18
        %v367 = vpop.permute.xlu0 %366
        %vm368 = vcmask 146432
        %v369 = vsel %vm368, %v365, %v367
        %v373 = vmul.f32 %v327, %v365
        %v374 = vmul.f32 %v328, %v369
        %v375 = vmul.f32 %v336, %v367
        %376 = vrot.lane.b32.xlu0 %v330, 32
        %v377 = vpop.permute.xlu0 %376
        %378 = vrot.lane.b32.xlu0 %v331, 32
        %v379 = vpop.permute.xlu0 %378
        %vm380 = vcmask 261120
        %v381 = vsel %vm380, %v377, %v379
        %v385 = vmul.f32 %v327, %v377
        %v386 = vmul.f32 %v328, %v381
        %v387 = vmul.f32 %v336, %v379
        %388 = vrot.lane.b32.xlu0 %v338, 34
        %v389 = vpop.permute.xlu0 %388
        %390 = vrot.lane.b32.xlu0 %v339, 34
        %v391 = vpop.permute.xlu0 %390
        %v392 = vsel %vm303, %v389, %v391
        %v396 = vmul.f32 %v327, %v389
        %v397 = vmul.f32 %v328, %v392
        %v398 = vmul.f32 %v336, %v391
        %402 = vrot.lane.b32.xlu0 %v327, 127
        %v403 = vpop.permute.xlu0 %402
        %404 = vrot.lane.b32.xlu0 %v328, 127
        %v405 = vpop.permute.xlu0 %404
        %406 = vrot.lane.b32.xlu0 %v336, 127
        %v407 = vpop.permute.xlu0 %406
        %vm408 = vcmask 1039360
        %v409 = vsel %vm408, %v403, %v405
        %v410 = vsel %vm408, %v405, %v407
        %416 = vrot.lane.b32.xlu0 %v349, 126
        %v417 = vpop.permute.xlu0 %416
        %418 = vrot.lane.b32.xlu0 %v350, 126
        %v419 = vpop.permute.xlu0 %418
        %420 = vrot.lane.b32.xlu0 %v351, 126
        %v421 = vpop.permute.xlu0 %420
        %vm422 = vcmask 1031168
        %v423 = vsel %vm422, %v417, %v419
        %v424 = vsel %vm422, %v419, %v421
        %430 = vrot.lane.b32.xlu0 %v361, 112
        %v431 = vpop.permute.xlu0 %430
        %432 = vrot.lane.b32.xlu0 %v362, 112
        %v433 = vpop.permute.xlu0 %432
        %434 = vrot.lane.b32.xlu0 %v363, 112
        %v435 = vpop.permute.xlu0 %434
        %vm436 = vcmask 916480
        %v437 = vsel %vm436, %v431, %v433
        %v438 = vsel %vm436, %v433, %v435
        %441 = vrot.lane.b32.xlu0 %v327, 111
        %v442 = vpop.permute.xlu0 %441
        %443 = vrot.lane.b32.xlu0 %v328, 111
        %v444 = vpop.permute.xlu0 %443
        %445 = vrot.lane.b32.xlu0 %v336, 111
        %v446 = vpop.permute.xlu0 %445
        %vm447 = vcmask 908288
        %v448 = vsel %vm447, %v442, %v444
        %v449 = vsel %vm447, %v444, %v446
        %455 = vrot.lane.b32.xlu0 %v373, 110
        %v456 = vpop.permute.xlu0 %455
        %457 = vrot.lane.b32.xlu0 %v374, 110
        %v458 = vpop.permute.xlu0 %457
        %459 = vrot.lane.b32.xlu0 %v375, 110
        %v460 = vpop.permute.xlu0 %459
        %vm461 = vcmask 900096
        %v462 = vsel %vm461, %v456, %v458
        %v463 = vsel %vm461, %v458, %v460
        %469 = vrot.lane.b32.xlu0 %v385, 96
        %v470 = vpop.permute.xlu0 %469
        %471 = vrot.lane.b32.xlu0 %v386, 96
        %v472 = vpop.permute.xlu0 %471
        %473 = vrot.lane.b32.xlu0 %v387, 96
        %v474 = vpop.permute.xlu0 %473
        %vm475 = vcmask 785408
        %v476 = vsel %vm475, %v470, %v472
        %v477 = vsel %vm475, %v472, %v474
        %480 = vrot.lane.b32.xlu0 %v327, 95
        %v481 = vpop.permute.xlu0 %480
        %482 = vrot.lane.b32.xlu0 %v328, 95
        %v483 = vpop.permute.xlu0 %482
        %484 = vrot.lane.b32.xlu0 %v336, 95
        %v485 = vpop.permute.xlu0 %484
        %vm486 = vcmask 777216
        %v487 = vsel %vm486, %v481, %v483
        %v488 = vsel %vm486, %v483, %v485
        %494 = vrot.lane.b32.xlu0 %v396, 94
        %v495 = vpop.permute.xlu0 %494
        %496 = vrot.lane.b32.xlu0 %v397, 94
        %v497 = vpop.permute.xlu0 %496
        %498 = vrot.lane.b32.xlu0 %v398, 94
        %v499 = vpop.permute.xlu0 %498
        %vm500 = vcmask 769024
        %v501 = vsel %vm500, %v495, %v497
        %v502 = vsel %vm500, %v497, %v499
        %506 = vset.pattern.permute.xlu0 0
        %507 = vperm.xlu0 %506, %v296
        %v508 = vpop.permute.xlu0 %507
        %vm510 = vcmask 588800
        %v512 = vsel %vm510, %v294, 0
        %514 = vmatpush.msra.mxu0 0.0
        %515 = vmatpush.msra.mxu0 0.0
        %516 = vmatpush.msra.mxu0 0.0
        %517 = vmatpush.msra.mxu0 0.0
        %518 = vmatpush.msra.mxu0 0.0
        %519 = vmatpush.msra.mxu0 0.0
        %520 = vmatpush.msra.mxu0 0.0
        %521 = vmatpush.msra.mxu0 %v501
        %522 = vmatpush.msra.mxu0 %v487
        %523 = vmatpush.msra.mxu0 %v476
        %524 = vmatpush.msra.mxu0 %v462
        %525 = vmatpush.msra.mxu0 %v448
        %526 = vmatpush.msra.mxu0 %v437
        %527 = vmatpush.msra.mxu0 %v423
        %528 = vmatpush.msra.mxu0 %v409
        %529 = vmatpush.msra.mxu0 %v334
        %530 = vmatmul.f32.gmra.mxu0 %v512
        %v531 = vpop.f32.mrf.mxu0
        %v532 = vadd.f32 %v508, %v531
        %533 = vdwg.mxu0
        %534 = vmatpush.msra.mxu0 0.0
        %535 = vmatpush.msra.mxu0 0.0
        %536 = vmatpush.msra.mxu0 0.0
        %537 = vmatpush.msra.mxu0 0.0
        %538 = vmatpush.msra.mxu0 0.0
        %539 = vmatpush.msra.mxu0 0.0
        %540 = vmatpush.msra.mxu0 0.0
        %541 = vmatpush.msra.mxu0 %v502
        %542 = vmatpush.msra.mxu0 %v488
        %543 = vmatpush.msra.mxu0 %v477
        %544 = vmatpush.msra.mxu0 %v463
        %545 = vmatpush.msra.mxu0 %v449
        %546 = vmatpush.msra.mxu0 %v438
        %547 = vmatpush.msra.mxu0 %v424
        %548 = vmatpush.msra.mxu0 %v410
        %549 = vmatpush.msra.mxu0 %v335
        %550 = vmatmul.f32.gmra.mxu0 %v512
        %v551 = vpop.f32.mrf.mxu0
        %v552 = vadd.f32 %v508, %v551
        %553 = vdwg.mxu0
        %v554 = vmax.f32 %v532, 0.0
        %v555 = vmax.f32 %v552, 0.0
        %558 = vrot.lane.b32.xlu0 %v554, 17
        %v559 = vpop.permute.xlu0 %558
        %560 = vrot.lane.b32.xlu0 %v555, 17
        %v561 = vpop.permute.xlu0 %560
        %v562 = vsel %vm314, %v559, %v561
        %vm566 = vcmask 1047688
        %567 = vst.msk [vmem:[#allocation3] sm:$0xff] %vm566, %v559
        %568 = vst [vmem:[#allocation3 + $0x8] sm:$0xff] %v562
        %569 = vst.msk [vmem:[#allocation3 + $0x10] sm:$0xff] %vm314, %v561
        %v570 = vld [vmem:[#allocation3] sm:$0xff]
        %v571 = vld [vmem:[#allocation3 + $0x8] sm:$0xff]
        %v572 = vmul.f32 %v570, %v330
        %v573 = vmul.f32 %v571, %v331
        %v574 = vld [vmem:[#allocation3 + $0x10] sm:$0xff]
        %v575 = vmul.f32 %v570, %v341
        %v576 = vmul.f32 %v571, %v345
        %v577 = vmul.f32 %v574, %v343
        %v578 = vmul.f32 %v570, %v353
        %v579 = vmul.f32 %v571, %v357
        %v580 = vmul.f32 %v574, %v355
        %v581 = vmul.f32 %v570, %v365
        %v582 = vmul.f32 %v571, %v369
        %v583 = vmul.f32 %v574, %v367
        %v584 = vmul.f32 %v570, %v377
        %v585 = vmul.f32 %v571, %v381
        %v586 = vmul.f32 %v574, %v379
        %v587 = vmul.f32 %v570, %v389
        %v588 = vmul.f32 %v571, %v392
        %v589 = vmul.f32 %v574, %v391
        %593 = vrot.lane.b32.xlu0 %v570, 127
        %v594 = vpop.permute.xlu0 %593
        %595 = vrot.lane.b32.xlu0 %v571, 127
        %v596 = vpop.permute.xlu0 %595
        %597 = vrot.lane.b32.xlu0 %v574, 127
        %v598 = vpop.permute.xlu0 %597
        %v599 = vsel %vm408, %v594, %v596
        %v600 = vsel %vm408, %v596, %v598
        %606 = vrot.lane.b32.xlu0 %v575, 126
        %v607 = vpop.permute.xlu0 %606
        %608 = vrot.lane.b32.xlu0 %v576, 126
        %v609 = vpop.permute.xlu0 %608
        %610 = vrot.lane.b32.xlu0 %v577, 126
        %v611 = vpop.permute.xlu0 %610
        %v612 = vsel %vm422, %v607, %v609
        %v613 = vsel %vm422, %v609, %v611
        %619 = vrot.lane.b32.xlu0 %v578, 112
        %v620 = vpop.permute.xlu0 %619
        %621 = vrot.lane.b32.xlu0 %v579, 112
        %v622 = vpop.permute.xlu0 %621
        %623 = vrot.lane.b32.xlu0 %v580, 112
        %v624 = vpop.permute.xlu0 %623
        %v625 = vsel %vm436, %v620, %v622
        %v626 = vsel %vm436, %v622, %v624
        %629 = vrot.lane.b32.xlu0 %v570, 111
        %v630 = vpop.permute.xlu0 %629
        %631 = vrot.lane.b32.xlu0 %v571, 111
        %v632 = vpop.permute.xlu0 %631
        %633 = vrot.lane.b32.xlu0 %v574, 111
        %v634 = vpop.permute.xlu0 %633
        %v635 = vsel %vm447, %v630, %v632
        %v636 = vsel %vm447, %v632, %v634
        %642 = vrot.lane.b32.xlu0 %v581, 110
        %v643 = vpop.permute.xlu0 %642
        %644 = vrot.lane.b32.xlu0 %v582, 110
        %v645 = vpop.permute.xlu0 %644
        %646 = vrot.lane.b32.xlu0 %v583, 110
        %v647 = vpop.permute.xlu0 %646
        %v648 = vsel %vm461, %v643, %v645
        %v649 = vsel %vm461, %v645, %v647
        %655 = vrot.lane.b32.xlu0 %v584, 96
        %v656 = vpop.permute.xlu0 %655
        %657 = vrot.lane.b32.xlu0 %v585, 96
        %v658 = vpop.permute.xlu0 %657
        %659 = vrot.lane.b32.xlu0 %v586, 96
        %v660 = vpop.permute.xlu0 %659
        %v661 = vsel %vm475, %v656, %v658
        %v662 = vsel %vm475, %v658, %v660
        %665 = vrot.lane.b32.xlu0 %v570, 95
        %v666 = vpop.permute.xlu0 %665
        %667 = vrot.lane.b32.xlu0 %v571, 95
        %v668 = vpop.permute.xlu0 %667
        %669 = vrot.lane.b32.xlu0 %v574, 95
        %v670 = vpop.permute.xlu0 %669
        %v671 = vsel %vm486, %v666, %v668
        %v672 = vsel %vm486, %v668, %v670
        %678 = vrot.lane.b32.xlu0 %v587, 94
        %v679 = vpop.permute.xlu0 %678
        %680 = vrot.lane.b32.xlu0 %v588, 94
        %v681 = vpop.permute.xlu0 %680
        %682 = vrot.lane.b32.xlu0 %v589, 94
        %v683 = vpop.permute.xlu0 %682
        %v684 = vsel %vm500, %v679, %v681
        %v685 = vsel %vm500, %v681, %v683
        %689 = vset.pattern.permute.xlu0 0
        %690 = vperm.xlu0 %689, %v297
        %v691 = vpop.permute.xlu0 %690
        %v694 = vsel %vm510, %v295, 0
        %696 = vmatpush.msra.mxu0 0.0
        %697 = vmatpush.msra.mxu0 0.0
        %698 = vmatpush.msra.mxu0 0.0
        %699 = vmatpush.msra.mxu0 0.0
        %700 = vmatpush.msra.mxu0 0.0
        %701 = vmatpush.msra.mxu0 0.0
        %702 = vmatpush.msra.mxu0 0.0
        %703 = vmatpush.msra.mxu0 %v684
        %704 = vmatpush.msra.mxu0 %v671
        %705 = vmatpush.msra.mxu0 %v661
        %706 = vmatpush.msra.mxu0 %v648
        %707 = vmatpush.msra.mxu0 %v635
        %708 = vmatpush.msra.mxu0 %v625
        %709 = vmatpush.msra.mxu0 %v612
        %710 = vmatpush.msra.mxu0 %v599
        %711 = vmatpush.msra.mxu0 %v572
        %712 = vmatmul.f32.gmra.mxu0 %v694
        %v713 = vpop.f32.mrf.mxu0
        %v714 = vadd.f32 %v691, %v713
        %715 = vdwg.mxu0
        %716 = vmatpush.msra.mxu0 0.0
        %717 = vmatpush.msra.mxu0 0.0
        %718 = vmatpush.msra.mxu0 0.0
        %719 = vmatpush.msra.mxu0 0.0
        %720 = vmatpush.msra.mxu0 0.0
        %721 = vmatpush.msra.mxu0 0.0
        %722 = vmatpush.msra.mxu0 0.0
        %723 = vmatpush.msra.mxu0 %v685
        %724 = vmatpush.msra.mxu0 %v672
        %725 = vmatpush.msra.mxu0 %v662
        %726 = vmatpush.msra.mxu0 %v649
        %727 = vmatpush.msra.mxu0 %v636
        %728 = vmatpush.msra.mxu0 %v626
        %729 = vmatpush.msra.mxu0 %v613
        %730 = vmatpush.msra.mxu0 %v600
        %731 = vmatpush.msra.mxu0 %v573
        %732 = vmatmul.f32.gmra.mxu0 %v694
        %v733 = vpop.f32.mrf.mxu0
        %v734 = vadd.f32 %v691, %v733
        %735 = vdwg.mxu0
        %v736 = vmax.f32 %v714, 0.0
        %v737 = vmax.f32 %v734, 0.0
        %v738 = vld [vmem:[%s293] sm:$0xff]
        %v741 = vrot.slane %v737, 4
        %vm742 = vcmask 1043456
        %v743 = vsel %vm742, %v736, %v741
        %v745 = vadd.f32 %v738, %v743
        %746 = vst [vmem:[%s288] sm:$0xff] %v745
        %s747 = sand.u32 %s161, 1
        %s748 = scalar_lea.sflag [#allocation6], %s747
        %s749 = sand.u32 %s161, 1
        %s750 = smul.addr %s749, 8
        %s751 = scalar_lea.vmem [#allocation10], %s750
        // Predicated region
        $region57: #{tpu_custom_call.1} parent=43 // pred_check
          %p752 = pneg %p171
        $region58: #{tpu_custom_call.1} parent=43 // pred_check_branch
          %754 = sbr.rel (%p752) target = $region60
        $region59: #{tpu_custom_call.1} parent=43 // pred_region
          %756 = vsyncadd %s748, 0
          %s757 = smul.addr %s22, 2
          %s758 = smul.addr %s757, 4
          %s759 = scalar_lea.hbm %s6, %s758
          %s761 = sshll.u32 %s751, 4
          %s762 = int_to_ptr.vmem [resolvable:$true] %s761
          %s763 = sshll.u32 %s759, 4
          %s764 = int_to_ptr.hbm [resolvable:$true] %s763
          %766 = dma.vmem_to_hbm [thread:$0]  %s762, 128, %s764, %s748
        $region60: #{tpu_custom_call.1} parent=43 // pred_fallthru
          _
      $region44: #{tpu_custom_call.1} parent=5 // pred_fallthru
        _
      %p767 = scmp.le.s32.totalorder 2, %s17
      // Predicated region
      $region61: #{tpu_custom_call.1} parent=5 // pred_check
        %p768 = pneg %p767
      $region62: #{tpu_custom_call.1} parent=5 // pred_check_branch
        %770 = sbr.rel (%p768) target = $region64
      $region63: #{tpu_custom_call.1} parent=5 // pred_region
        %s771 = ssub.s32 %s17, 2
        // Predicated region
        $region65: #{tpu_custom_call.1} parent=63 // pred_check
          %p772 = pneg %p177
        $region66: #{tpu_custom_call.1} parent=63 // pred_check_branch
          %774 = sbr.rel (%p772) target = $region68
        $region67: #{tpu_custom_call.1} parent=63 // pred_region
          %s775 = sand.u32 %s162, 1
          %s776 = scalar_lea.sflag [#allocation6], %s775
          %s777 = sand.u32 %s162, 1
          %s778 = smul.addr %s777, 8
          %s779 = scalar_lea.vmem [#allocation10], %s778
          %781 = dma.done %s776, 128
        $region68: #{tpu_custom_call.1} parent=63 // pred_fallthru
          _
      $region64: #{tpu_custom_call.1} parent=5 // pred_fallthru
        _
    $region6: #{tpu_custom_call.1} parent=1 // loop_footer
      %s21 = sadd.s32 1, %s17
    $region7: #{tpu_custom_call.1} parent=1 // loop_footer_branch
      %16 = sbr.rel target = $region3
    $region8: #{tpu_custom_call.1} parent=1 // loop_exit
      _
    %782 = vsyncpa [#allocation5], 1
    %s783 = scalar_lea.sflag [#allocation5], 1
    %784 = vsyncpa %s783, 1
    %785 = vsyncpa [#allocation8], 1
    %786 = vsyncpa [#allocation6], 1
    %s787 = scalar_lea.sflag [#allocation6], 1
    %788 = vsyncpa %s787, 1

// kernel: tpu_custom_call.1
$region0: #{tpu_custom_call.1}
  #allocation0 [shape = 'u32[]', space=smem, size = 0x4, offset = 0x4, fixed_abs, tag = 'smem constant byte address 0x4 - core index']
  #allocation1 [shape = 'u32[72,128]{1,0:T(1,128)}', space=vmem, size = 0x9000, scoped, tag = 'internal scratch']
  #allocation2 [shape = 'f32[8,290]{1,0:T(8,128)}', space=vmem, size = 0x3000, scoped, tag = 'scratch operand']
  #allocation3 [shape = 'f32[8,290]{1,0:T(8,128)}', space=vmem, size = 0x3000, scoped, tag = 'scratch operand']
  %s0 = inlined_call_operand.vmem [shape: f32[2,4,256], index: 0, kind: input, shape index: {}]
  %s1 = inlined_call_operand.hbm [shape: f32[2,256], index: 1, kind: input, shape index: {}]
  %s2 = inlined_call_operand.hbm [shape: f32[8,72], index: 2, kind: input, shape index: {}]
  %s3 = inlined_call_operand.vmem [shape: f32[8,1], index: 3, kind: input, shape index: {}]
  %s4 = inlined_call_operand.hbm [shape: f32[8,72], index: 4, kind: input, shape index: {}]
  %s5 = inlined_call_operand.vmem [shape: f32[8,1], index: 5, kind: input, shape index: {}]
  %s6 = inlined_call_operand.hbm [shape: f32[2,4,256], index: 6, kind: output, shape index: {}]
  %s7 = sld [smem:[#allocation0]]
  $region69: #{tpu_custom_call.1} parent=0
    _
  %s9 = ssub.s32 1, %s7
  %s10 = scalar_select 0, %s9, %s7
  $region1: #{tpu_custom_call.1} parent=0
    #allocation4 [shape = 'u8[2048]{0}', space=vmem, size = 0x800, scoped, tag = 'input window, operand 1, single buffered']
    #allocation5 [shape = 's32[2]{0}', space=sflag, size = 0x8, scoped, tag = 'scoped memory for tpu_custom_call.1']
    #allocation6 [shape = 's32[2]{0}', space=sflag, size = 0x8, scoped, tag = 'scoped memory for tpu_custom_call.1']
    #allocation7 [shape = 'u8[4096]{0}', space=vmem, size = 0x1000, scoped, tag = 'input window, operand 2, single buffered']
    #allocation8 [shape = 's32[1]{0}', space=sflag, size = 0x4, scoped, tag = 'scoped memory for tpu_custom_call.1']
    #allocation9 [shape = 'u8[4096]{0}', space=vmem, size = 0x1000, scoped, tag = 'input window, operand 4, single buffered']
    #allocation10 [shape = 'u8[8192]{0}', space=vmem, size = 0x2000, scoped, tag = 'output window, operand 0']
    %11 = vsyncpa [#allocation5], 0
    %12 = vsyncpa [#allocation8], 0
    %13 = vsyncpa [#allocation6], 0
    %s14 = scalar_lea.sflag [#allocation6], 1
    %15 = vsyncpa %s14, 0
    loop: start=0, step=1, limit=4
    $region2: #{tpu_custom_call.1} parent=1 // loop_pre_header
      _
    $region3: #{tpu_custom_call.1} parent=1 // loop_header
      %s17 = sphi 0, %s21
      %p18 = scmp.ge.s32.totalorder %s17, 4
      %s27 = sphi 0, %s29
      %s30 = sphi 0, %s27
      %s31 = sphi 0, %s30
      %s47 = sphi 0, %s31
      %s51 = sphi 0, %s51
      %s53 = sphi 0, %s51
      %s54 = sphi 0, %s53
      %s68 = sphi 0, %s54
      %s72 = sphi 0, %s72
      %s74 = sphi 0, %s72
      %s75 = sphi 0, %s74
      %s89 = sphi 0, %s75
      %s93 = sphi 0, %s93
      %s95 = sphi 0, %s93
      %s96 = sphi 0, %s95
      %s110 = sphi 0, %s96
      %s114 = sphi 0, %s114
      %s116 = sphi 0, %s114
      %s117 = sphi 0, %s116
      %s131 = sphi 0, %s117
      %s135 = sphi 0, %s135
      %s137 = sphi 0, %s135
      %s138 = sphi 0, %s137
      %s152 = sphi 0, %s138
      %s158 = sphi 0, %s160
      %s161 = sphi 0, %s158
      %s162 = sphi 0, %s161
      %s178 = sphi 0, %s162
    $region4: #{tpu_custom_call.1} parent=1 // loop_header_branch
      %20 = sbr.rel (%p18) target = $region8
    $region5: #{tpu_custom_call.1} parent=1 // loop_body
      %s22 = ssub.s32 %s17, 1
      %s23 = ssub.s32 %s17, 2
      %s24 = sadd.s32 %s17, 1
      %s25 = ssub.s32 %s17, %s24
      %p26 = scmp.eq.s32.totalorder %s25, 0
      %s28 = sadd.s32 %s27, 1
      %s29 = scalar_select %p26, %s27, %s28
      %p32 = pneg %p26
      %p33 = scmp.eq.s32.totalorder %s17, 1
      %p34 = por %p32, %p33
      %p35 = scmp.ne.s32.totalorder %s27, %s30
      %p36 = scmp.eq.s32.totalorder %s17, 0
      %p37 = por %p35, %p36
      %p38 = scmp.ne.s32.totalorder %s27, %s30
      %p39 = scmp.eq.s32.totalorder %s22, 1
      %p40 = por %p38, %p39
      %p41 = scmp.ne.s32.totalorder %s30, %s31
      %p42 = scmp.eq.s32.totalorder %s22, 0
      %p43 = por %p41, %p42
      %p44 = scmp.ne.s32.totalorder %s30, %s31
      %p45 = scmp.eq.s32.totalorder %s23, 1
      %p46 = por %p44, %p45
      %p48 = scmp.ne.s32.totalorder %s31, %s47
      %p49 = scmp.eq.s32.totalorder %s23, 0
      %p50 = por %p48, %p49
      %s52 = sadd.s32 %s51, 1
      %p55 = scmp.eq.s32.totalorder %s17, 1
      %p56 = scmp.ne.s32.totalorder %s51, %s53
      %p57 = scmp.eq.s32.totalorder %s17, 0
      %p58 = por %p56, %p57
      %p59 = scmp.ne.s32.totalorder %s51, %s53
      %p60 = scmp.eq.s32.totalorder %s22, 1
      %p61 = por %p59, %p60
      %p62 = scmp.ne.s32.totalorder %s53, %s54
      %p63 = scmp.eq.s32.totalorder %s22, 0
      %p64 = por %p62, %p63
      %p65 = scmp.ne.s32.totalorder %s53, %s54
      %p66 = scmp.eq.s32.totalorder %s23, 1
      %p67 = por %p65, %p66
      %p69 = scmp.ne.s32.totalorder %s54, %s68
      %p70 = scmp.eq.s32.totalorder %s23, 0
      %p71 = por %p69, %p70
      %s73 = sadd.s32 %s72, 1
      %p76 = scmp.eq.s32.totalorder %s17, 1
      %p77 = scmp.ne.s32.totalorder %s72, %s74
      %p78 = scmp.eq.s32.totalorder %s17, 0
      %p79 = por %p77, %p78
      %p80 = scmp.ne.s32.totalorder %s72, %s74
      %p81 = scmp.eq.s32.totalorder %s22, 1
      %p82 = por %p80, %p81
      %p83 = scmp.ne.s32.totalorder %s74, %s75
      %p84 = scmp.eq.s32.totalorder %s22, 0
      %p85 = por %p83, %p84
      %p86 = scmp.ne.s32.totalorder %s74, %s75
      %p87 = scmp.eq.s32.totalorder %s23, 1
      %p88 = por %p86, %p87
      %p90 = scmp.ne.s32.totalorder %s75, %s89
      %p91 = scmp.eq.s32.totalorder %s23, 0
      %p92 = por %p90, %p91
      %s94 = sadd.s32 %s93, 1
      %p97 = scmp.eq.s32.totalorder %s17, 1
      %p98 = scmp.ne.s32.totalorder %s93, %s95
      %p99 = scmp.eq.s32.totalorder %s17, 0
      %p100 = por %p98, %p99
      %p101 = scmp.ne.s32.totalorder %s93, %s95
      %p102 = scmp.eq.s32.totalorder %s22, 1
      %p103 = por %p101, %p102
      %p104 = scmp.ne.s32.totalorder %s95, %s96
      %p105 = scmp.eq.s32.totalorder %s22, 0
      %p106 = por %p104, %p105
      %p107 = scmp.ne.s32.totalorder %s95, %s96
      %p108 = scmp.eq.s32.totalorder %s23, 1
      %p109 = por %p107, %p108
      %p111 = scmp.ne.s32.totalorder %s96, %s110
      %p112 = scmp.eq.s32.totalorder %s23, 0
      %p113 = por %p111, %p112
      %s115 = sadd.s32 %s114, 1
      %p118 = scmp.eq.s32.totalorder %s17, 1
      %p119 = scmp.ne.s32.totalorder %s114, %s116
      %p120 = scmp.eq.s32.totalorder %s17, 0
      %p121 = por %p119, %p120
      %p122 = scmp.ne.s32.totalorder %s114, %s116
      %p123 = scmp.eq.s32.totalorder %s22, 1
      %p124 = por %p122, %p123
      %p125 = scmp.ne.s32.totalorder %s116, %s117
      %p126 = scmp.eq.s32.totalorder %s22, 0
      %p127 = por %p125, %p126
      %p128 = scmp.ne.s32.totalorder %s116, %s117
      %p129 = scmp.eq.s32.totalorder %s23, 1
      %p130 = por %p128, %p129
      %p132 = scmp.ne.s32.totalorder %s117, %s131
      %p133 = scmp.eq.s32.totalorder %s23, 0
      %p134 = por %p132, %p133
      %s136 = sadd.s32 %s135, 1
      %p139 = scmp.eq.s32.totalorder %s17, 1
      %p140 = scmp.ne.s32.totalorder %s135, %s137
      %p141 = scmp.eq.s32.totalorder %s17, 0
      %p142 = por %p140, %p141
      %p143 = scmp.ne.s32.totalorder %s135, %s137
      %p144 = scmp.eq.s32.totalorder %s22, 1
      %p145 = por %p143, %p144
      %p146 = scmp.ne.s32.totalorder %s137, %s138
      %p147 = scmp.eq.s32.totalorder %s22, 0
      %p148 = por %p146, %p147
      %p149 = scmp.ne.s32.totalorder %s137, %s138
      %p150 = scmp.eq.s32.totalorder %s23, 1
      %p151 = por %p149, %p150
      %p153 = scmp.ne.s32.totalorder %s138, %s152
      %p154 = scmp.eq.s32.totalorder %s23, 0
      %p155 = por %p153, %p154
      %s156 = ssub.s32 %s17, %s24
      %p157 = scmp.eq.s32.totalorder %s156, 0
      %s159 = sadd.s32 %s158, 1
      %s160 = scalar_select %p157, %s158, %s159
      %p163 = pneg %p157
      %p164 = scmp.eq.s32.totalorder %s17, 1
      %p165 = por %p163, %p164
      %p166 = scmp.ne.s32.totalorder %s158, %s161
      %p167 = scmp.eq.s32.totalorder %s17, 0
      %p168 = por %p166, %p167
      %p169 = scmp.ne.s32.totalorder %s158, %s161
      %p170 = scmp.eq.s32.totalorder %s22, 1
      %p171 = por %p169, %p170
      %p172 = scmp.ne.s32.totalorder %s161, %s162
      %p173 = scmp.eq.s32.totalorder %s22, 0
      %p174 = por %p172, %p173
      %p175 = scmp.ne.s32.totalorder %s161, %s162
      %p176 = scmp.eq.s32.totalorder %s23, 1
      %p177 = por %p175, %p176
      %p179 = scmp.ne.s32.totalorder %s162, %s178
      %p180 = scmp.eq.s32.totalorder %s23, 0
      %p181 = por %p179, %p180
      %p182 = scmp.le.s32.totalorder 1, %s17
      %p183 = scmp.lt.s32.totalorder %s17, 3
      %p184 = pnand %p182, %p183
      %p185 = pneg %p184
      // Predicated region
      $region9: #{tpu_custom_call.1} parent=5 // pred_check
        _
      $region10: #{tpu_custom_call.1} parent=5 // pred_check_branch
        %187 = sbr.rel (%p184) target = $region12
      $region11: #{tpu_custom_call.1} parent=5 // pred_region
        %s188 = ssub.s32 %s17, 1
        // Predicated region
        $region13: #{tpu_custom_call.1} parent=11 // pred_check
          %p189 = pneg %p64
        $region14: #{tpu_custom_call.1} parent=11 // pred_check_branch
          %191 = sbr.rel (%p189) target = $region16
        $region15: #{tpu_custom_call.1} parent=11 // pred_region
          %193 = vsyncadd [#allocation5], 0
          %s195 = sshll.u32 %s1, 4
          %s196 = int_to_ptr.hbm [resolvable:$true] %s195
          %s197 = sshll.u32 [#allocation4], 4
          %s198 = int_to_ptr.vmem [resolvable:$true] %s197
          %200 = dma.hbm_to_vmem [thread:$0]  %s196, 64, %s198, [#allocation5]
        $region16: #{tpu_custom_call.1} parent=11 // pred_fallthru
          _
        // Predicated region
        $region17: #{tpu_custom_call.1} parent=11 // pred_check
          %p201 = pneg %p85
        $region18: #{tpu_custom_call.1} parent=11 // pred_check_branch
          %203 = sbr.rel (%p201) target = $region20
        $region19: #{tpu_custom_call.1} parent=11 // pred_region
          %205 = vsyncadd [#allocation8], 0
          %s207 = sshll.u32 %s2, 4
          %s208 = int_to_ptr.hbm [resolvable:$true] %s207
          %s209 = sshll.u32 [#allocation7], 4
          %s210 = int_to_ptr.vmem [resolvable:$true] %s209
          %212 = dma.hbm_to_vmem [thread:$0]  %s208, 128, %s210, [#allocation8]
        $region20: #{tpu_custom_call.1} parent=11 // pred_fallthru
          _
        // Predicated region
        $region21: #{tpu_custom_call.1} parent=11 // pred_check
          %p213 = pneg %p106
        $region22: #{tpu_custom_call.1} parent=11 // pred_check_branch
          %215 = sbr.rel (%p213) target = $region24
        $region23: #{tpu_custom_call.1} parent=11 // pred_region
          _
        $region24: #{tpu_custom_call.1} parent=11 // pred_fallthru
          _
        // Predicated region
        $region25: #{tpu_custom_call.1} parent=11 // pred_check
          %p216 = pneg %p127
        $region26: #{tpu_custom_call.1} parent=11 // pred_check_branch
          %218 = sbr.rel (%p216) target = $region28
        $region27: #{tpu_custom_call.1} parent=11 // pred_region
          %220 = vsyncadd [#allocation8], 0
          %s222 = sshll.u32 %s4, 4
          %s223 = int_to_ptr.hbm [resolvable:$true] %s222
          %s224 = sshll.u32 [#allocation9], 4
          %s225 = int_to_ptr.vmem [resolvable:$true] %s224
          %227 = dma.hbm_to_vmem [thread:$0]  %s223, 128, %s225, [#allocation8]
        $region28: #{tpu_custom_call.1} parent=11 // pred_fallthru
          _
        // Predicated region
        $region29: #{tpu_custom_call.1} parent=11 // pred_check
          %p228 = pneg %p148
        $region30: #{tpu_custom_call.1} parent=11 // pred_check_branch
          %230 = sbr.rel (%p228) target = $region32
        $region31: #{tpu_custom_call.1} parent=11 // pred_region
          _
        $region32: #{tpu_custom_call.1} parent=11 // pred_fallthru
          _
      $region12: #{tpu_custom_call.1} parent=5 // pred_fallthru
        _
      %p231 = scmp.lt.s32.totalorder %s17, 2
      // Predicated region
      $region33: #{tpu_custom_call.1} parent=5 // pred_check
        %p232 = pneg %p231
      $region34: #{tpu_custom_call.1} parent=5 // pred_check_branch
        %234 = sbr.rel (%p232) target = $region36
      $region35: #{tpu_custom_call.1} parent=5 // pred_region
        // Predicated region
        $region37: #{tpu_custom_call.1} parent=35 // pred_check
          %p235 = pneg %p37
        $region38: #{tpu_custom_call.1} parent=35 // pred_check_branch
          %237 = sbr.rel (%p235) target = $region40
        $region39: #{tpu_custom_call.1} parent=35 // pred_region
          %p238 = scmp.lt.s32.totalorder %s17, 1
          %s239 = scalar_select %p238, %s17, 1
          %s240 = smul.addr %s239, 2
          %s241 = smul.addr %s240, 4
          %s242 = scalar_lea.vmem %s0, %s241
        $region40: #{tpu_custom_call.1} parent=35 // pred_fallthru
          _
      $region36: #{tpu_custom_call.1} parent=5 // pred_fallthru
        _
      %p243 = scmp.le.s32.totalorder 1, %s17
      %p244 = scmp.lt.s32.totalorder %s17, 3
      %p245 = pnand %p243, %p244
      %p246 = pneg %p245
      // Predicated region
      $region41: #{tpu_custom_call.1} parent=5 // pred_check
        _
      $region42: #{tpu_custom_call.1} parent=5 // pred_check_branch
        %248 = sbr.rel (%p245) target = $region44
      $region43: #{tpu_custom_call.1} parent=5 // pred_region
        %s249 = ssub.s32 %s17, 1
        // Predicated region
        $region45: #{tpu_custom_call.1} parent=43 // pred_check
          %p250 = pneg %p64
        $region46: #{tpu_custom_call.1} parent=43 // pred_check_branch
          %252 = sbr.rel (%p250) target = $region48
        $region47: #{tpu_custom_call.1} parent=43 // pred_region
          %254 = dma.done [#allocation5], 64
        $region48: #{tpu_custom_call.1} parent=43 // pred_fallthru
          _
        // Predicated region
        $region49: #{tpu_custom_call.1} parent=43 // pred_check
          %p255 = pneg %p85
        $region50: #{tpu_custom_call.1} parent=43 // pred_check_branch
          %257 = sbr.rel (%p255) target = $region52
        $region51: #{tpu_custom_call.1} parent=43 // pred_region
          %259 = dma.done [#allocation8], 128
        $region52: #{tpu_custom_call.1} parent=43 // pred_fallthru
          _
        // Predicated region
        $region53: #{tpu_custom_call.1} parent=43 // pred_check
          %p260 = pneg %p127
        $region54: #{tpu_custom_call.1} parent=43 // pred_check_branch
          %262 = sbr.rel (%p260) target = $region56
        $region55: #{tpu_custom_call.1} parent=43 // pred_region
          %264 = dma.done [#allocation8], 128
        $region56: #{tpu_custom_call.1} parent=43 // pred_fallthru
          _
        %p265 = scmp.lt.s32.totalorder %s22, 1
        %s266 = scalar_select %p265, %s22, 1
        %s267 = smul.addr %s266, 2
        %s268 = smul.addr %s267, 4
        %s269 = scalar_lea.vmem %s0, %s268
        %p270 = pneg %p43
        %p271 = pneg %p40
        %p272 = pneg %p64
        %p273 = pneg %p61
        %p274 = pneg %p85
        %p275 = pneg %p82
        %p276 = pneg %p106
        %p277 = pneg %p103
        %p278 = pneg %p127
        %p279 = pneg %p124
        %p280 = pneg %p148
        %p281 = pneg %p145
        %p282 = pneg %p174
        %p283 = pneg %p171
        %s284 = sand.u32 %s161, 1
        %s285 = scalar_lea.sflag [#allocation6], %s284
        %s286 = sand.u32 %s161, 1
        %s287 = smul.addr %s286, 8
        %s288 = scalar_lea.vmem [#allocation10], %s287
        %p289 = scmp.lt.s32.totalorder %s22, 1
        %s290 = scalar_select %p289, %s22, 1
        %s291 = smul.addr %s290, 2
        %s292 = smul.addr %s291, 4
        %s293 = scalar_lea.vmem %s0, %s292
        %v294 = vld [vmem:[#allocation7] sm:$0xff]
        %v295 = vld [vmem:[#allocation9] sm:$0xff]
        %v296 = vld [vmem:[%s3] sm:$0xff]
        %v297 = vld [vmem:[%s5] sm:$0xff]
        %v298 = vld [vmem:[#allocation4] ss:$2 sm:$0x3]
        %s299 = scalar_lea.vmem [#allocation4], 1
        %v300 = vld [vmem:[%s299] ss:$2 sm:$0x3]
        %301 = vst [vmem:[#allocation2] sm:$0xff] 0.0
        %302 = vst [vmem:[#allocation2 + $0x8] sm:$0xff] 0.0
        %vm303 = vcmask 277504
        %304 = vst.msk [vmem:[#allocation2 + $0x10] sm:$0xff] %vm303, 0.0
        %v305 = vld [vmem:[%s293] sm:$0xff]
        %307 = vst [vmem:[#allocation1] ss:$2 sm:$0xff] %v305
        %v308 = vld.sshfl [vmem:[#allocation1] sm:$0xff pattern:$0x75316420]
        %v309 = vld.sshfl [vmem:[#allocation1 + $0x8] sm:$0xff pattern:$0x75316420]
        %310 = vrot.lane.b32.xlu0 %v308, 17
        %v311 = vpop.permute.xlu0 %310
        %312 = vrot.lane.b32.xlu0 %v309, 17
        %v313 = vpop.permute.xlu0 %312
        %vm314 = vcmask 138240
        %v315 = vsel %vm314, %v311, %v313
        %vm319 = vcmask 1043592
        %320 = vst.msk [vmem:[#allocation2] sm:$0xf] %vm319, %v311
        %321 = vst [vmem:[#allocation2 + $0x8] sm:$0xf] %v315
        %vm322 = vcmask 134144
        %323 = vst.msk [vmem:[#allocation2 + $0x10] sm:$0xf] %vm322, %v313
        %324 = vst [vmem:[#allocation3] sm:$0xff] 0.0
        %325 = vst [vmem:[#allocation3 + $0x8] sm:$0xff] 0.0
        %326 = vst.msk [vmem:[#allocation3 + $0x10] sm:$0xff] %vm303, 0.0
        %v327 = vld [vmem:[#allocation2] sm:$0xff]
        %v328 = vld [vmem:[#allocation2 + $0x8] sm:$0xff]
        %v330 = vperm.slane %v298, 0
        %v331 = vperm.slane %v298, 1
        %v334 = vmul.f32 %v327, %v330
        %v335 = vmul.f32 %v328, %v331
        %v336 = vld [vmem:[#allocation2 + $0x10] sm:$0xff]
        %v338 = vperm.slane %v300, 0
        %v339 = vperm.slane %v300, 1
        %340 = vrot.lane.b32.xlu0 %v338, 2
        %v341 = vpop.permute.xlu0 %340
        %342 = vrot.lane.b32.xlu0 %v339, 2
        %v343 = vpop.permute.xlu0 %342
        %vm344 = vcmask 15360
        %v345 = vsel %vm344, %v341, %v343
        %v349 = vmul.f32 %v327, %v341
        %v350 = vmul.f32 %v328, %v345
        %v351 = vmul.f32 %v336, %v343
        %352 = vrot.lane.b32.xlu0 %v330, 16
        %v353 = vpop.permute.xlu0 %352
        %354 = vrot.lane.b32.xlu0 %v331, 16
        %v355 = vpop.permute.xlu0 %354
        %vm356 = vcmask 130048
        %v357 = vsel %vm356, %v353, %v355
        %v361 = vmul.f32 %v327, %v353
        %v362 = vmul.f32 %v328, %v357
        %v363 = vmul.f32 %v336, %v355
        %364 = vrot.lane.b32.xlu0 %v338, 18
        %v365 = vpop.permute.xlu0 %364
        %366 = vrot.lane.b32.xlu0 %v339, 18
        %v367 = vpop.permute.xlu0 %366
        %vm368 = vcmask 146432
        %v369 = vsel %vm368, %v365, %v367
        %v373 = vmul.f32 %v327, %v365
        %v374 = vmul.f32 %v328, %v369
        %v375 = vmul.f32 %v336, %v367
        %376 = vrot.lane.b32.xlu0 %v330, 32
        %v377 = vpop.permute.xlu0 %376
        %378 = vrot.lane.b32.xlu0 %v331, 32
        %v379 = vpop.permute.xlu0 %378
        %vm380 = vcmask 261120
        %v381 = vsel %vm380, %v377, %v379
        %v385 = vmul.f32 %v327, %v377
        %v386 = vmul.f32 %v328, %v381
        %v387 = vmul.f32 %v336, %v379
        %388 = vrot.lane.b32.xlu0 %v338, 34
        %v389 = vpop.permute.xlu0 %388
        %390 = vrot.lane.b32.xlu0 %v339, 34
        %v391 = vpop.permute.xlu0 %390
        %v392 = vsel %vm303, %v389, %v391
        %v396 = vmul.f32 %v327, %v389
        %v397 = vmul.f32 %v328, %v392
        %v398 = vmul.f32 %v336, %v391
        %402 = vrot.lane.b32.xlu0 %v327, 127
        %v403 = vpop.permute.xlu0 %402
        %404 = vrot.lane.b32.xlu0 %v328, 127
        %v405 = vpop.permute.xlu0 %404
        %406 = vrot.lane.b32.xlu0 %v336, 127
        %v407 = vpop.permute.xlu0 %406
        %vm408 = vcmask 1039360
        %v409 = vsel %vm408, %v403, %v405
        %v410 = vsel %vm408, %v405, %v407
        %416 = vrot.lane.b32.xlu0 %v349, 126
        %v417 = vpop.permute.xlu0 %416
        %418 = vrot.lane.b32.xlu0 %v350, 126
        %v419 = vpop.permute.xlu0 %418
        %420 = vrot.lane.b32.xlu0 %v351, 126
        %v421 = vpop.permute.xlu0 %420
        %vm422 = vcmask 1031168
        %v423 = vsel %vm422, %v417, %v419
        %v424 = vsel %vm422, %v419, %v421
        %430 = vrot.lane.b32.xlu0 %v361, 112
        %v431 = vpop.permute.xlu0 %430
        %432 = vrot.lane.b32.xlu0 %v362, 112
        %v433 = vpop.permute.xlu0 %432
        %434 = vrot.lane.b32.xlu0 %v363, 112
        %v435 = vpop.permute.xlu0 %434
        %vm436 = vcmask 916480
        %v437 = vsel %vm436, %v431, %v433
        %v438 = vsel %vm436, %v433, %v435
        %441 = vrot.lane.b32.xlu0 %v327, 111
        %v442 = vpop.permute.xlu0 %441
        %443 = vrot.lane.b32.xlu0 %v328, 111
        %v444 = vpop.permute.xlu0 %443
        %445 = vrot.lane.b32.xlu0 %v336, 111
        %v446 = vpop.permute.xlu0 %445
        %vm447 = vcmask 908288
        %v448 = vsel %vm447, %v442, %v444
        %v449 = vsel %vm447, %v444, %v446
        %455 = vrot.lane.b32.xlu0 %v373, 110
        %v456 = vpop.permute.xlu0 %455
        %457 = vrot.lane.b32.xlu0 %v374, 110
        %v458 = vpop.permute.xlu0 %457
        %459 = vrot.lane.b32.xlu0 %v375, 110
        %v460 = vpop.permute.xlu0 %459
        %vm461 = vcmask 900096
        %v462 = vsel %vm461, %v456, %v458
        %v463 = vsel %vm461, %v458, %v460
        %469 = vrot.lane.b32.xlu0 %v385, 96
        %v470 = vpop.permute.xlu0 %469
        %471 = vrot.lane.b32.xlu0 %v386, 96
        %v472 = vpop.permute.xlu0 %471
        %473 = vrot.lane.b32.xlu0 %v387, 96
        %v474 = vpop.permute.xlu0 %473
        %vm475 = vcmask 785408
        %v476 = vsel %vm475, %v470, %v472
        %v477 = vsel %vm475, %v472, %v474
        %480 = vrot.lane.b32.xlu0 %v327, 95
        %v481 = vpop.permute.xlu0 %480
        %482 = vrot.lane.b32.xlu0 %v328, 95
        %v483 = vpop.permute.xlu0 %482
        %484 = vrot.lane.b32.xlu0 %v336, 95
        %v485 = vpop.permute.xlu0 %484
        %vm486 = vcmask 777216
        %v487 = vsel %vm486, %v481, %v483
        %v488 = vsel %vm486, %v483, %v485
        %494 = vrot.lane.b32.xlu0 %v396, 94
        %v495 = vpop.permute.xlu0 %494
        %496 = vrot.lane.b32.xlu0 %v397, 94
        %v497 = vpop.permute.xlu0 %496
        %498 = vrot.lane.b32.xlu0 %v398, 94
        %v499 = vpop.permute.xlu0 %498
        %vm500 = vcmask 769024
        %v501 = vsel %vm500, %v495, %v497
        %v502 = vsel %vm500, %v497, %v499
        %506 = vset.pattern.permute.xlu0 0
        %507 = vperm.xlu0 %506, %v296
        %v508 = vpop.permute.xlu0 %507
        %vm510 = vcmask 588800
        %v512 = vsel %vm510, %v294, 0
        %514 = vmatpush.msra.mxu0 0.0
        %515 = vmatpush.msra.mxu0 0.0
        %516 = vmatpush.msra.mxu0 0.0
        %517 = vmatpush.msra.mxu0 0.0
        %518 = vmatpush.msra.mxu0 0.0
        %519 = vmatpush.msra.mxu0 0.0
        %520 = vmatpush.msra.mxu0 0.0
        %521 = vmatpush.msra.mxu0 %v501
        %522 = vmatpush.msra.mxu0 %v487
        %523 = vmatpush.msra.mxu0 %v476
        %524 = vmatpush.msra.mxu0 %v462
        %525 = vmatpush.msra.mxu0 %v448
        %526 = vmatpush.msra.mxu0 %v437
        %527 = vmatpush.msra.mxu0 %v423
        %528 = vmatpush.msra.mxu0 %v409
        %529 = vmatpush.msra.mxu0 %v334
        %530 = vmatmul.f32.gmra.mxu0 %v512
        %v531 = vpop.f32.mrf.mxu0
        %v532 = vadd.f32 %v508, %v531
        %533 = vdwg.mxu0
        %534 = vmatpush.msra.mxu0 0.0
        %535 = vmatpush.msra.mxu0 0.0
        %536 = vmatpush.msra.mxu0 0.0
        %537 = vmatpush.msra.mxu0 0.0
        %538 = vmatpush.msra.mxu0 0.0
        %539 = vmatpush.msra.mxu0 0.0
        %540 = vmatpush.msra.mxu0 0.0
        %541 = vmatpush.msra.mxu0 %v502
        %542 = vmatpush.msra.mxu0 %v488
        %543 = vmatpush.msra.mxu0 %v477
        %544 = vmatpush.msra.mxu0 %v463
        %545 = vmatpush.msra.mxu0 %v449
        %546 = vmatpush.msra.mxu0 %v438
        %547 = vmatpush.msra.mxu0 %v424
        %548 = vmatpush.msra.mxu0 %v410
        %549 = vmatpush.msra.mxu0 %v335
        %550 = vmatmul.f32.gmra.mxu0 %v512
        %v551 = vpop.f32.mrf.mxu0
        %v552 = vadd.f32 %v508, %v551
        %553 = vdwg.mxu0
        %v554 = vmax.f32 %v532, 0.0
        %v555 = vmax.f32 %v552, 0.0
        %558 = vrot.lane.b32.xlu0 %v554, 17
        %v559 = vpop.permute.xlu0 %558
        %560 = vrot.lane.b32.xlu0 %v555, 17
        %v561 = vpop.permute.xlu0 %560
        %v562 = vsel %vm314, %v559, %v561
        %vm566 = vcmask 1047688
        %567 = vst.msk [vmem:[#allocation3] sm:$0xff] %vm566, %v559
        %568 = vst [vmem:[#allocation3 + $0x8] sm:$0xff] %v562
        %569 = vst.msk [vmem:[#allocation3 + $0x10] sm:$0xff] %vm314, %v561
        %v570 = vld [vmem:[#allocation3] sm:$0xff]
        %v571 = vld [vmem:[#allocation3 + $0x8] sm:$0xff]
        %v572 = vmul.f32 %v570, %v330
        %v573 = vmul.f32 %v571, %v331
        %v574 = vld [vmem:[#allocation3 + $0x10] sm:$0xff]
        %v575 = vmul.f32 %v570, %v341
        %v576 = vmul.f32 %v571, %v345
        %v577 = vmul.f32 %v574, %v343
        %v578 = vmul.f32 %v570, %v353
        %v579 = vmul.f32 %v571, %v357
        %v580 = vmul.f32 %v574, %v355
        %v581 = vmul.f32 %v570, %v365
        %v582 = vmul.f32 %v571, %v369
        %v583 = vmul.f32 %v574, %v367
        %v584 = vmul.f32 %v570, %v377
        %v585 = vmul.f32 %v571, %v381
        %v586 = vmul.f32 %v574, %v379
        %v587 = vmul.f32 %v570, %v389
        %v588 = vmul.f32 %v571, %v392
        %v589 = vmul.f32 %v574, %v391
        %593 = vrot.lane.b32.xlu0 %v570, 127
        %v594 = vpop.permute.xlu0 %593
        %595 = vrot.lane.b32.xlu0 %v571, 127
        %v596 = vpop.permute.xlu0 %595
        %597 = vrot.lane.b32.xlu0 %v574, 127
        %v598 = vpop.permute.xlu0 %597
        %v599 = vsel %vm408, %v594, %v596
        %v600 = vsel %vm408, %v596, %v598
        %606 = vrot.lane.b32.xlu0 %v575, 126
        %v607 = vpop.permute.xlu0 %606
        %608 = vrot.lane.b32.xlu0 %v576, 126
        %v609 = vpop.permute.xlu0 %608
        %610 = vrot.lane.b32.xlu0 %v577, 126
        %v611 = vpop.permute.xlu0 %610
        %v612 = vsel %vm422, %v607, %v609
        %v613 = vsel %vm422, %v609, %v611
        %619 = vrot.lane.b32.xlu0 %v578, 112
        %v620 = vpop.permute.xlu0 %619
        %621 = vrot.lane.b32.xlu0 %v579, 112
        %v622 = vpop.permute.xlu0 %621
        %623 = vrot.lane.b32.xlu0 %v580, 112
        %v624 = vpop.permute.xlu0 %623
        %v625 = vsel %vm436, %v620, %v622
        %v626 = vsel %vm436, %v622, %v624
        %629 = vrot.lane.b32.xlu0 %v570, 111
        %v630 = vpop.permute.xlu0 %629
        %631 = vrot.lane.b32.xlu0 %v571, 111
        %v632 = vpop.permute.xlu0 %631
        %633 = vrot.lane.b32.xlu0 %v574, 111
        %v634 = vpop.permute.xlu0 %633
        %v635 = vsel %vm447, %v630, %v632
        %v636 = vsel %vm447, %v632, %v634
        %642 = vrot.lane.b32.xlu0 %v581, 110
        %v643 = vpop.permute.xlu0 %642
        %644 = vrot.lane.b32.xlu0 %v582, 110
        %v645 = vpop.permute.xlu0 %644
        %646 = vrot.lane.b32.xlu0 %v583, 110
        %v647 = vpop.permute.xlu0 %646
        %v648 = vsel %vm461, %v643, %v645
        %v649 = vsel %vm461, %v645, %v647
        %655 = vrot.lane.b32.xlu0 %v584, 96
        %v656 = vpop.permute.xlu0 %655
        %657 = vrot.lane.b32.xlu0 %v585, 96
        %v658 = vpop.permute.xlu0 %657
        %659 = vrot.lane.b32.xlu0 %v586, 96
        %v660 = vpop.permute.xlu0 %659
        %v661 = vsel %vm475, %v656, %v658
        %v662 = vsel %vm475, %v658, %v660
        %665 = vrot.lane.b32.xlu0 %v570, 95
        %v666 = vpop.permute.xlu0 %665
        %667 = vrot.lane.b32.xlu0 %v571, 95
        %v668 = vpop.permute.xlu0 %667
        %669 = vrot.lane.b32.xlu0 %v574, 95
        %v670 = vpop.permute.xlu0 %669
        %v671 = vsel %vm486, %v666, %v668
        %v672 = vsel %vm486, %v668, %v670
        %678 = vrot.lane.b32.xlu0 %v587, 94
        %v679 = vpop.permute.xlu0 %678
        %680 = vrot.lane.b32.xlu0 %v588, 94
        %v681 = vpop.permute.xlu0 %680
        %682 = vrot.lane.b32.xlu0 %v589, 94
        %v683 = vpop.permute.xlu0 %682
        %v684 = vsel %vm500, %v679, %v681
        %v685 = vsel %vm500, %v681, %v683
        %689 = vset.pattern.permute.xlu0 0
        %690 = vperm.xlu0 %689, %v297
        %v691 = vpop.permute.xlu0 %690
        %v694 = vsel %vm510, %v295, 0
        %696 = vmatpush.msra.mxu0 0.0
        %697 = vmatpush.msra.mxu0 0.0
        %698 = vmatpush.msra.mxu0 0.0
        %699 = vmatpush.msra.mxu0 0.0
        %700 = vmatpush.msra.mxu0 0.0
        %701 = vmatpush.msra.mxu0 0.0
        %702 = vmatpush.msra.mxu0 0.0
        %703 = vmatpush.msra.mxu0 %v684
        %704 = vmatpush.msra.mxu0 %v671
        %705 = vmatpush.msra.mxu0 %v661
        %706 = vmatpush.msra.mxu0 %v648
        %707 = vmatpush.msra.mxu0 %v635
        %708 = vmatpush.msra.mxu0 %v625
        %709 = vmatpush.msra.mxu0 %v612
        %710 = vmatpush.msra.mxu0 %v599
        %711 = vmatpush.msra.mxu0 %v572
        %712 = vmatmul.f32.gmra.mxu0 %v694
        %v713 = vpop.f32.mrf.mxu0
        %v714 = vadd.f32 %v691, %v713
        %715 = vdwg.mxu0
        %716 = vmatpush.msra.mxu0 0.0
        %717 = vmatpush.msra.mxu0 0.0
        %718 = vmatpush.msra.mxu0 0.0
        %719 = vmatpush.msra.mxu0 0.0
        %720 = vmatpush.msra.mxu0 0.0
        %721 = vmatpush.msra.mxu0 0.0
        %722 = vmatpush.msra.mxu0 0.0
        %723 = vmatpush.msra.mxu0 %v685
        %724 = vmatpush.msra.mxu0 %v672
        %725 = vmatpush.msra.mxu0 %v662
        %726 = vmatpush.msra.mxu0 %v649
        %727 = vmatpush.msra.mxu0 %v636
        %728 = vmatpush.msra.mxu0 %v626
        %729 = vmatpush.msra.mxu0 %v613
        %730 = vmatpush.msra.mxu0 %v600
        %731 = vmatpush.msra.mxu0 %v573
        %732 = vmatmul.f32.gmra.mxu0 %v694
        %v733 = vpop.f32.mrf.mxu0
        %v734 = vadd.f32 %v691, %v733
        %735 = vdwg.mxu0
        %v736 = vmax.f32 %v714, 0.0
        %v737 = vmax.f32 %v734, 0.0
        %v738 = vld [vmem:[%s293] sm:$0xff]
        %v741 = vrot.slane %v737, 4
        %vm742 = vcmask 1043456
        %v743 = vsel %vm742, %v736, %v741
        %v745 = vadd.f32 %v738, %v743
        %746 = vst [vmem:[%s288] sm:$0xff] %v745
        %s747 = sand.u32 %s161, 1
        %s748 = scalar_lea.sflag [#allocation6], %s747
        %s749 = sand.u32 %s161, 1
        %s750 = smul.addr %s749, 8
        %s751 = scalar_lea.vmem [#allocation10], %s750
        // Predicated region
        $region57: #{tpu_custom_call.1} parent=43 // pred_check
          %p752 = pneg %p171
        $region58: #{tpu_custom_call.1} parent=43 // pred_check_branch
          %754 = sbr.rel (%p752) target = $region60
        $region59: #{tpu_custom_call.1} parent=43 // pred_region
          %756 = vsyncadd %s748, 0
          %s757 = smul.addr %s22, 2
          %s758 = smul.addr %s757, 4
          %s759 = scalar_lea.hbm %s6, %s758
          %s761 = sshll.u32 %s751, 4
          %s762 = int_to_ptr.vmem [resolvable:$true] %s761
          %s763 = sshll.u32 %s759, 4
          %s764 = int_to_ptr.hbm [resolvable:$true] %s763
          %766 = dma.vmem_to_hbm [thread:$0]  %s762, 128, %s764, %s748
        $region60: #{tpu_custom_call.1} parent=43 // pred_fallthru
          _
      $region44: #{tpu_custom_call.1} parent=5 // pred_fallthru
        _
      %p767 = scmp.le.s32.totalorder 2, %s17
      // Predicated region
      $region61: #{tpu_custom_call.1} parent=5 // pred_check
        %p768 = pneg %p767
      $region62: #{tpu_custom_call.1} parent=5 // pred_check_branch
        %770 = sbr.rel (%p768) target = $region64
      $region63: #{tpu_custom_call.1} parent=5 // pred_region
        %s771 = ssub.s32 %s17, 2
        // Predicated region
        $region65: #{tpu_custom_call.1} parent=63 // pred_check
          %p772 = pneg %p177
        $region66: #{tpu_custom_call.1} parent=63 // pred_check_branch
          %774 = sbr.rel (%p772) target = $region68
        $region67: #{tpu_custom_call.1} parent=63 // pred_region
          %s775 = sand.u32 %s162, 1
          %s776 = scalar_lea.sflag [#allocation6], %s775
          %s777 = sand.u32 %s162, 1
          %s778 = smul.addr %s777, 8
          %s779 = scalar_lea.vmem [#allocation10], %s778
          %781 = dma.done %s776, 128
        $region68: #{tpu_custom_call.1} parent=63 // pred_fallthru
          _
      $region64: #{tpu_custom_call.1} parent=5 // pred_fallthru
        _
    $region6: #{tpu_custom_call.1} parent=1 // loop_footer
      %s21 = sadd.s32 1, %s17
    $region7: #{tpu_custom_call.1} parent=1 // loop_footer_branch
      %16 = sbr.rel target = $region3
    $region8: #{tpu_custom_call.1} parent=1 // loop_exit
      _
    %782 = vsyncpa [#allocation5], 1
    %s783 = scalar_lea.sflag [#allocation5], 1
    %784 = vsyncpa %s783, 1
    %785 = vsyncpa [#allocation8], 1
    %786 = vsyncpa [#allocation6], 1
    %s787 = scalar_lea.sflag [#allocation6], 1
    %788 = vsyncpa %s787, 1

</llo_original>
